<compile_context>
chip_gen: v7x
topology: tpu7x:2x2x1
jax: 0.10.0
libtpu: 0.0.40
codegen_flags: <defaults>
</compile_context>

<pallas_src>
import functools
import math

import jax
import jax.numpy as jnp
from jax.experimental import pallas as pl
from jax.experimental.pallas import tpu as pltpu


MASK_FILL = -1e30
LN_EPS = 1e-6
_MIN_VMEM = 32 * 1024 * 1024
_MAX_VMEM = 64 * 1024 * 1024


def _round_up(n, m):
    return ((n + m - 1) // m) * m


# ---------------------------------------------------------------------------
# Probe whether single-buffering constant operands via pl.Buffered(1) works in
# this JAX build; if not, fall back to default (double-buffered) BlockSpecs.
# ---------------------------------------------------------------------------
def _probe_buffered_support():
    try:
        def k(x_ref, w_ref, o_ref):
            o_ref[...] = x_ref[...] + w_ref[...]

        x = jnp.zeros((16, 128), jnp.float32)
        w = jnp.zeros((8, 128), jnp.float32)
        f = pl.pallas_call(
            k,
            out_shape=jax.ShapeDtypeStruct((16, 128), jnp.float32),
            grid=(2,),
            in_specs=[
                pl.BlockSpec((8, 128), lambda i: (i, 0)),
                pl.BlockSpec((8, 128), lambda i: (0, 0),
                             pipeline_mode=pl.Buffered(1)),
            ],
            out_specs=pl.BlockSpec((8, 128), lambda i: (i, 0)),
            compiler_params=pltpu.CompilerParams(
                dimension_semantics=("parallel",)),
        )
        jax.block_until_ready(f(x, w))
        return True
    except Exception:
        return False


_BUFFERED_OK = _probe_buffered_support()


def _const_spec(shape):
    """BlockSpec for an operand identical across all grid steps (weights)."""
    zeros = (0,) * len(shape)
    index_map = lambda *_: zeros
    if _BUFFERED_OK:
        return pl.BlockSpec(shape, index_map, pipeline_mode=pl.Buffered(1))
    return pl.BlockSpec(shape, index_map)


def _compiler_params(vmem_estimate_bytes, dimension_semantics):
    limit = int(vmem_estimate_bytes * 1.5) + (4 << 20)
    limit = max(_MIN_VMEM, min(limit, _MAX_VMEM))
    return pltpu.CompilerParams(dimension_semantics=dimension_semantics,
                                vmem_limit_bytes=limit)


_WBUF = 1 if _BUFFERED_OK else 2     # VMEM buffer count for constant weights


# ----------------------------- in-kernel helpers -----------------------------

def _layer_norm(x, g, b, eps=LN_EPS):
    # one-pass variance: E[x^2] - mean^2 (single XLU reduction pair per row)
    mean = jnp.mean(x, axis=-1, keepdims=True)
    msq = jnp.mean(x * x, axis=-1, keepdims=True)
    var = jnp.maximum(msq - mean * mean, 0.0)
    return (x - mean) * jax.lax.rsqrt(var + eps) * g + b


def _mha(q16, k16, v16, bias, wo, bo, h, dk, attn_scr):
    """Multi-head attention, bf16 MXU operands / f32 accumulation.

    q16: (Lq, D) bf16, already scaled by 1/sqrt(dk); k16/v16: (Lk, D) bf16;
    bias: (Lq or 1, Lk) f32 additive mask (MASK_FILL where masked);
    wo: (D, D) bf16; bo: (1, D) f32; attn_scr: (Lq, D) f32 VMEM scratch.
    Returns (Lq, D) f32.
    """
    for hh in range(h):                      # static unroll over heads
        lo = hh * dk
        s = jax.lax.dot_general(q16[:, lo:lo + dk], k16[:, lo:lo + dk],
                                (((1,), (1,)), ((), ())),
                                preferred_element_type=jnp.float32)
        s = s + bias                          # single additive mask per head
        # max-subtraction keeps fully-masked rows finite (uniform weights)
        s = s - jnp.max(s, axis=-1, keepdims=True)
        p = jnp.exp(s)
        denom = jnp.sum(p, axis=-1, keepdims=True)
        p = p * pl.reciprocal(denom, approx=True)       # EUP slot, ~free
        attn_scr[:, lo:lo + dk] = jnp.dot(p.astype(jnp.bfloat16),
                                          v16[:, lo:lo + dk],
                                          preferred_element_type=jnp.float32)
    return (jnp.dot(attn_scr[...].astype(jnp.bfloat16), wo,
                    preferred_element_type=jnp.float32) + bo)


def _ffn(y, w1, b1, w2, b2):
    hid = jnp.dot(y.astype(jnp.bfloat16), w1,
                  preferred_element_type=jnp.float32) + b1
    hid = jnp.maximum(hid, 0.0)
    return jnp.dot(hid.astype(jnp.bfloat16), w2,
                   preferred_element_type=jnp.float32) + b2


# ----------------------------- Pallas kernels -----------------------------

def _encoder_layer_kernel(x_ref, sbias_ref, g0_ref, be0_ref, wqkv_ref,
                          bqkv_ref, wo_ref, bo_ref, g1_ref, be1_ref,
                          w1_ref, bf1_ref, w2_ref, bf2_ref,
                          o_ref, attn_scr, *, h, dk, scale):
    x = x_ref[0]                              # (L, D) f32
    d = h * dk
    # --- self-attention sublayer ---
    y = _layer_norm(x, g0_ref[...], be0_ref[...])
    qkv = (jnp.dot(y.astype(jnp.bfloat16), wqkv_ref[...],
                   preferred_element_type=jnp.float32) + bqkv_ref[...])
    q16 = (qkv[:, :d] * scale).astype(jnp.bfloat16)
    k16 = qkv[:, d:2 * d].astype(jnp.bfloat16)
    v16 = qkv[:, 2 * d:].astype(jnp.bfloat16)
    x = x + _mha(q16, k16, v16, sbias_ref[0], wo_ref[...], bo_ref[...],
                 h, dk, attn_scr)
    # --- FFN sublayer (fused; residual stream never leaves VMEM) ---
    y = _layer_norm(x, g1_ref[...], be1_ref[...])
    o_ref[0] = x + _ffn(y, w1_ref[...], bf1_ref[...], w2_ref[...], bf2_ref[...])


def _decoder_layer_kernel(x_ref, mem_ref, sbias_ref,
                          g0_ref, be0_ref, wqkv_ref, bqkv_ref, wo0_ref, bo0_ref,
                          g1_ref, be1_ref, wq_ref, bq_ref, wkv_ref, bkv_ref,
                          wo1_ref, bo1_ref,
                          g2_ref, be2_ref, w1_ref, bf1_ref, w2_ref, bf2_ref,
                          o_ref, attn_scr, *, h, dk, scale):
    x = x_ref[0]                              # (Lq, D) f32
    m = mem_ref[0]                            # (Lk, D) f32
    d = h * dk
    lq = x.shape[0]
    # --- masked self-attention (causal bias built in-kernel, no HBM mask) ---
    row = jax.lax.broadcasted_iota(jnp.int32, (lq, lq), 0)
    col = jax.lax.broadcasted_iota(jnp.int32, (lq, lq), 1)
    causal_bias = jnp.where(col > row, jnp.float32(MASK_FILL),
                            jnp.float32(0.0))
    y = _layer_norm(x, g0_ref[...], be0_ref[...])
    qkv = (jnp.dot(y.astype(jnp.bfloat16), wqkv_ref[...],
                   preferred_element_type=jnp.float32) + bqkv_ref[...])
    q16 = (qkv[:, :d] * scale).astype(jnp.bfloat16)
    k16 = qkv[:, d:2 * d].astype(jnp.bfloat16)
    v16 = qkv[:, 2 * d:].astype(jnp.bfloat16)
    x = x + _mha(q16, k16, v16, causal_bias, wo0_ref[...], bo0_ref[...],
                 h, dk, attn_scr)
    # --- cross-attention over encoder memory ---
    y = _layer_norm(x, g1_ref[...], be1_ref[...])
    q = (jnp.dot(y.astype(jnp.bfloat16), wq_ref[...],
                 preferred_element_type=jnp.float32) + bq_ref[...])
    kv = (jnp.dot(m.astype(jnp.bfloat16), wkv_ref[...],
                  preferred_element_type=jnp.float32) + bkv_ref[...])
    q16 = (q * scale).astype(jnp.bfloat16)
    k16 = kv[:, :d].astype(jnp.bfloat16)
    v16 = kv[:, d:].astype(jnp.bfloat16)
    x = x + _mha(q16, k16, v16, sbias_ref[0], wo1_ref[...], bo1_ref[...],
                 h, dk, attn_scr)
    # --- FFN sublayer ---
    y = _layer_norm(x, g2_ref[...], be2_ref[...])
    o_ref[0] = x + _ffn(y, w1_ref[...], bf1_ref[...], w2_ref[...], bf2_ref[...])


def _final_ln_kernel(x_ref, g_ref, b_ref, o_ref):
    o_ref[0] = _layer_norm(x_ref[0], g_ref[...], b_ref[...])


def _ln_generator_kernel(x_ref, g_ref, b_ref, w_ref, bias_ref, o_ref,
                         *, inv_temp):
    y = _layer_norm(x_ref[0], g_ref[...], b_ref[...])
    logits = (jnp.dot(y.astype(jnp.bfloat16), w_ref[...],
                      preferred_element_type=jnp.float32)
              + bias_ref[...]) * inv_temp
    mx = jnp.max(logits, axis=-1, keepdims=True)
    z = logits - mx
    lse = jnp.log(jnp.sum(jnp.exp(z), axis=-1, keepdims=True))
    o_ref[0] = z - lse


# ----------------------------- kernel wrappers -----------------------------

def encoder_layer(x, src_bias, p, h):
    """x: (B, L, D) f32; src_bias: (B, 1, L) f32 additive mask."""
    B, L, D = x.shape
    dk = D // h
    sa, ff = p['self_attn'], p['ffn']
    Dh = ff['w1'].shape[1]
    est = (2 * 2 * (L * D * 4)                                   # x in + out
           + _WBUF * (D * 3 * D + D * D + D * Dh + Dh * D) * 2   # bf16 weights
           + 2 * (3 * D + 6 * D + Dh + L) * 4                    # biases / LN / mask
           + L * D * 4                                           # scratch
           + (L * 3 * D + L * Dh + 2 * L * L + 4 * L * D) * 4)   # intermediates
    return pl.pallas_call(
        functools.partial(_encoder_layer_kernel, h=h, dk=dk,
                          scale=1.0 / math.sqrt(dk)),
        out_shape=jax.ShapeDtypeStruct((B, L, D), jnp.float32),
        grid=(B,),
        in_specs=[
            pl.BlockSpec((1, L, D), lambda i: (i, 0, 0)),
            pl.BlockSpec((1, 1, L), lambda i: (i, 0, 0)),
            _const_spec((1, D)), _const_spec((1, D)),
            _const_spec((D, 3 * D)), _const_spec((1, 3 * D)),
            _const_spec((D, D)), _const_spec((1, D)),
            _const_spec((1, D)), _const_spec((1, D)),
            _const_spec((D, Dh)), _const_spec((1, Dh)),
            _const_spec((Dh, D)), _const_spec((1, D)),
        ],
        out_specs=pl.BlockSpec((1, L, D), lambda i: (i, 0, 0)),
        scratch_shapes=[pltpu.VMEM((L, D), jnp.float32)],
        compiler_params=_compiler_params(est, ("parallel",)),
    )(x, src_bias,
      p['ln0_g'][None, :], p['ln0_b'][None, :],
      sa['wqkv'], sa['bqkv'][None, :], sa['wo'], sa['bo'][None, :],
      p['ln1_g'][None, :], p['ln1_b'][None, :],
      ff['w1'], ff['b1'][None, :], ff['w2'], ff['b2'][None, :])


def decoder_layer(x, memory, src_bias, p, h):
    """x: (B, Lq, D); memory: (B, Lk, D); src_bias: (B, 1, Lk) f32 additive."""
    B, Lq, D = x.shape
    Lk = memory.shape[1]
    dk = D // h
    sa, ca, ff = p['self_attn'], p['src_attn'], p['ffn']
    Dh = ff['w1'].shape[1]
    est = (2 * (Lq * D + Lk * D + Lq * D) * 4
           + _WBUF * (3 * D * D + D * D + D * D + 2 * D * D + D * D
                      + D * Dh + Dh * D) * 2
           + 2 * (3 * D + 2 * D + Dh + 10 * D + Lk) * 4
           + Lq * D * 4
           + (Lq * 3 * D + Lk * 2 * D + Lq * Dh
              + 2 * Lq * Lq + 2 * Lq * Lk + 4 * Lq * D) * 4)
    return pl.pallas_call(
        functools.partial(_decoder_layer_kernel, h=h, dk=dk,
                          scale=1.0 / math.sqrt(dk)),
        out_shape=jax.ShapeDtypeStruct((B, Lq, D), jnp.float32),
        grid=(B,),
        in_specs=[
            pl.BlockSpec((1, Lq, D), lambda i: (i, 0, 0)),
            pl.BlockSpec((1, Lk, D), lambda i: (i, 0, 0)),
            pl.BlockSpec((1, 1, Lk), lambda i: (i, 0, 0)),
            _const_spec((1, D)), _const_spec((1, D)),
            _const_spec((D, 3 * D)), _const_spec((1, 3 * D)),
            _const_spec((D, D)), _const_spec((1, D)),
            _const_spec((1, D)), _const_spec((1, D)),
            _const_spec((D, D)), _const_spec((1, D)),
            _const_spec((D, 2 * D)), _const_spec((1, 2 * D)),
            _const_spec((D, D)), _const_spec((1, D)),
            _const_spec((1, D)), _const_spec((1, D)),
            _const_spec((D, Dh)), _const_spec((1, Dh)),
            _const_spec((Dh, D)), _const_spec((1, D)),
        ],
        out_specs=pl.BlockSpec((1, Lq, D), lambda i: (i, 0, 0)),
        scratch_shapes=[pltpu.VMEM((Lq, D), jnp.float32)],
        compiler_params=_compiler_params(est, ("parallel",)),
    )(x, memory, src_bias,
      p['ln0_g'][None, :], p['ln0_b'][None, :],
      sa['wqkv'], sa['bqkv'][None, :], sa['wo'], sa['bo'][None, :],
      p['ln1_g'][None, :], p['ln1_b'][None, :],
      ca['wq'], ca['bq'][None, :], ca['wkv'], ca['bkv'][None, :],
      ca['wo'], ca['bo'][None, :],
      p['ln2_g'][None, :], p['ln2_b'][None, :],
      ff['w1'], ff['b1'][None, :], ff['w2'], ff['b2'][None, :])


def final_layer_norm(x, g, b):
    B, L, D = x.shape
    est = 2 * 2 * L * D * 4 + 2 * 2 * D * 4 + 2 * L * D * 4
    return pl.pallas_call(
        _final_ln_kernel,
        out_shape=jax.ShapeDtypeStruct((B, L, D), jnp.float32),
        grid=(B,),
        in_specs=[pl.BlockSpec((1, L, D), lambda i: (i, 0, 0)),
                  _const_spec((1, D)), _const_spec((1, D))],
        out_specs=pl.BlockSpec((1, L, D), lambda i: (i, 0, 0)),
        compiler_params=_compiler_params(est, ("parallel",)),
    )(x, g[None, :], b[None, :])


def ln_generator(x, ln_g, ln_b, w, b, temperature):
    """log_softmax((LN(x) @ w + b) / T, axis=-1); vocab padded to 128 lanes."""
    B, L, D = x.shape
    V = w.shape[1]
    Vp = _round_up(V, 128)
    if Vp != V:
        w = jnp.pad(w, ((0, 0), (0, Vp - V)))
        b = jnp.pad(b, (0, Vp - V), constant_values=MASK_FILL)
    # TODO(synk): vocab-tiled online logsumexp for very large vocab on v7x.
    est = (2 * (L * D + L * Vp) * 4 + _WBUF * D * Vp * 2
           + 2 * (2 * D + Vp) * 4 + 2 * L * Vp * 4)
    out = pl.pallas_call(
        functools.partial(_ln_generator_kernel,
                          inv_temp=1.0 / float(temperature)),
        out_shape=jax.ShapeDtypeStruct((B, L, Vp), jnp.float32),
        grid=(B,),
        in_specs=[
            pl.BlockSpec((1, L, D), lambda i: (i, 0, 0)),
            _const_spec((1, D)), _const_spec((1, D)),
            _const_spec((D, Vp)), _const_spec((1, Vp)),
        ],
        out_specs=pl.BlockSpec((1, L, Vp), lambda i: (i, 0, 0)),
        compiler_params=_compiler_params(est, ("parallel",)),
    )(x, ln_g[None, :], ln_b[None, :], w, b[None, :])
    return out[..., :V] if Vp != V else out


# ----------------------------- model glue -----------------------------

def encoder_fwd(x, src_bias, p, h):
    y = x
    for lp in p['layers']:
        y = encoder_layer(y, src_bias, lp, h)
    return final_layer_norm(y, p['ln_g'], p['ln_b'])


def decoder_fwd(x, memory, src_bias, temperature, p, h):
    y = x
    for lp in p['layers']:
        y = decoder_layer(y, memory, src_bias, lp, h)
    return ln_generator(y, p['ln_g'], p['ln_b'], p['gen_w'], p['gen_b'],
                        temperature)


def style_transformer_forward(params, cfg, inp_tokens, gold_tokens,
                              inp_lengths, style, temperature=1.0):
    """Equivalent of StyleTransformer.forward(..., generate=False)."""
    B, max_enc_len = inp_tokens.shape
    max_length = cfg['max_length']
    h = cfg['h']
    assert max_enc_len <= max_length

    pos_idx = jnp.broadcast_to(jnp.arange(max_length)[None, :], (B, max_length))

    # src mask as an ADDITIVE bias (MASK_FILL where masked, style token free)
    src_mask = pos_idx[:, :max_enc_len] >= inp_lengths[:, None]
    src_mask = jnp.concatenate(
        [jnp.zeros_like(src_mask[:, :1]), src_mask], axis=1)      # (B, Le+1)
    src_bias = jnp.where(src_mask, jnp.float32(MASK_FILL),
                         jnp.float32(0.0))[:, None, :]            # (B, 1, Le+1)
    # causal tgt mask is generated inside the decoder-layer kernel via iota.

    # embeddings (glue: gathers stay in plain JAX)
    style_emb = params['style_embed'][style][:, None, :]                 # (B,1,D)
    tok_emb = (params['token_embed'][inp_tokens]
               + params['pos_embed'][pos_idx[:, :max_enc_len]])          # (B,Le,D)
    enc_input = jnp.concatenate([style_emb, tok_emb], axis=1)            # (B,Le+1,D)

    memory = encoder_fwd(enc_input, src_bias, params['encoder'], h)

    sos = jnp.broadcast_to(params['sos_token'][None, None, :],
                           (B, 1, cfg['d_model']))
    max_dec_len = gold_tokens.shape[1]
    dec_input = gold_tokens[:, :-1]
    dec_emb = (params['token_embed'][dec_input]
               + params['pos_embed'][pos_idx[:, :max_dec_len - 1]])
    dec_input_emb = jnp.concatenate([sos, dec_emb], axis=1)              # (B,Ld,D)

    log_probs = decoder_fwd(dec_input_emb, memory, src_bias,
                            temperature, params['decoder'], h)
    return log_probs


# ----------------------------- parameter init -----------------------------

def _init_linear(key, din, dout, w_dtype=jnp.bfloat16):
    bound = math.sqrt(6.0 / (din + dout))       # xavier-uniform style
    w = jax.random.uniform(key, (din, dout), jnp.float32, -bound, bound)
    return w.astype(w_dtype), jnp.zeros((dout,), jnp.float32)


def _init_self_mha(key, d):
    ks = jax.random.split(key, 4)
    wq, _ = _init_linear(ks[0], d, d)
    wk, _ = _init_linear(ks[1], d, d)
    wv, _ = _init_linear(ks[2], d, d)
    wo, bo = _init_linear(ks[3], d, d)
    return dict(wqkv=jnp.concatenate([wq, wk, wv], axis=1),   # (D, 3D) bf16
                bqkv=jnp.zeros((3 * d,), jnp.float32),
                wo=wo, bo=bo)


def _init_cross_mha(key, d):
    ks = jax.random.split(key, 4)
    wq, bq = _init_linear(ks[0], d, d)
    wk, _ = _init_linear(ks[1], d, d)
    wv, _ = _init_linear(ks[2], d, d)
    wo, bo = _init_linear(ks[3], d, d)
    return dict(wq=wq, bq=bq,
                wkv=jnp.concatenate([wk, wv], axis=1),        # (D, 2D) bf16
                bkv=jnp.zeros((2 * d,), jnp.float32),
                wo=wo, bo=bo)


def _init_ffn(key, d):
    k1, k2 = jax.random.split(key)
    w1, b1 = _init_linear(k1, d, 4 * d)
    w2, b2 = _init_linear(k2, 4 * d, d)
    return dict(w1=w1, b1=b1, w2=w2, b2=b2)


def _init_enc_layer(key, d):
    k1, k2 = jax.random.split(key)
    return dict(self_attn=_init_self_mha(k1, d), ffn=_init_ffn(k2, d),
                ln0_g=jnp.ones((d,), jnp.float32), ln0_b=jnp.zeros((d,), jnp.float32),
                ln1_g=jnp.ones((d,), jnp.float32), ln1_b=jnp.zeros((d,), jnp.float32))


def _init_dec_layer(key, d):
    k1, k2, k3 = jax.random.split(key, 3)
    return dict(self_attn=_init_self_mha(k1, d), src_attn=_init_cross_mha(k2, d),
                ffn=_init_ffn(k3, d),
                ln0_g=jnp.ones((d,), jnp.float32), ln0_b=jnp.zeros((d,), jnp.float32),
                ln1_g=jnp.ones((d,), jnp.float32), ln1_b=jnp.zeros((d,), jnp.float32),
                ln2_g=jnp.ones((d,), jnp.float32), ln2_b=jnp.zeros((d,), jnp.float32))


def init_params(key, cfg):
    d = cfg['d_model']
    v = cfg['vocab_size']
    keys = jax.random.split(key, 8)
    enc_layers = [_init_enc_layer(k, d)
                  for k in jax.random.split(keys[0], cfg['num_layers'])]
    dec_layers = [_init_dec_layer(k, d)
                  for k in jax.random.split(keys[1], cfg['num_layers'])]
    gen_w, gen_b = _init_linear(keys[2], d, v)
    return dict(
        style_embed=0.05 * jax.random.normal(keys[3], (cfg['num_styles'], d)),
        token_embed=0.05 * jax.random.normal(keys[4], (v, d)),
        pos_embed=0.05 * jax.random.normal(keys[5], (cfg['max_length'], d)),
        sos_token=jax.random.normal(keys[6], (d,)),
        encoder=dict(layers=enc_layers,
                     ln_g=jnp.ones((d,), jnp.float32),
                     ln_b=jnp.zeros((d,), jnp.float32)),
        decoder=dict(layers=dec_layers,
                     ln_g=jnp.ones((d,), jnp.float32),
                     ln_b=jnp.zeros((d,), jnp.float32),
                     gen_w=gen_w, gen_b=gen_b),
    )


# ----------------------------- main -----------------------------

if __name__ == "__main__":
    cfg = dict(num_styles=2, num_layers=2, d_model=32, max_length=16,
               h=4, vocab_size=20)

    key = jax.random.PRNGKey(0)
    kp, k1, k2, k3 = jax.random.split(key, 4)
    params = init_params(kp, cfg)

    B, SEQ = 2, 8
    inp_tokens = jax.random.randint(k1, (B, SEQ), 0, cfg['vocab_size'], jnp.int32)
    gold_tokens = jax.random.randint(k2, (B, SEQ), 0, cfg['vocab_size'], jnp.int32)
    inp_lengths = jnp.array([8, 5], jnp.int32)
    style = jnp.array([0, 1], jnp.int32)

    log_probs = style_transformer_forward(
        params, cfg, inp_tokens, gold_tokens, inp_lengths, style,
        temperature=1.0)
    log_probs = jax.block_until_ready(log_probs)

    assert log_probs.shape == (B, SEQ, cfg['vocab_size'])
    assert bool(jnp.all(jnp.isfinite(log_probs)))
    # log_softmax rows should (approximately) exponentiate-sum to 1
    assert bool(jnp.allclose(jnp.exp(log_probs).sum(-1), 1.0, atol=1e-4))
    print("KERNEL_OK")
</pallas_src>

<mosaic_0001>
module attributes {stable_mosaic.version = 11 : i64} {
  func.func @k(%arg0: i32, %arg1: memref<8x128xf32, #tpu.memory_space<vmem>>, %arg2: memref<8x128xf32, #tpu.memory_space<vmem>>, %arg3: memref<8x128xf32, #tpu.memory_space<vmem>>) attributes {dimension_semantics = [#tpu.dimension_semantics<parallel>], iteration_bounds = array<i64: 2>, scalar_prefetch = 0 : i64, scratch_operands = 0 : i64, tpu.core_type = #tpu.core_type<tc>, window_params = [{transform_indices = @transform_0, window_bounds = array<i64: 8, 128>}, {pipeline_mode = #tpu.pipeline_mode<synchronous>, transform_indices = @transform_1, window_bounds = array<i64: 8, 128>}, {transform_indices = @transform_2, window_bounds = array<i64: 8, 128>}]} {
    %c0 = arith.constant 0 : index
    %c0_0 = arith.constant 0 : index
    %0 = vector.load %arg1[%c0, %c0_0] : memref<8x128xf32, #tpu.memory_space<vmem>>, vector<8x128xf32>
    %c0_1 = arith.constant 0 : index
    %c0_2 = arith.constant 0 : index
    %1 = vector.load %arg2[%c0_1, %c0_2] : memref<8x128xf32, #tpu.memory_space<vmem>>, vector<8x128xf32>
    %2 = arith.addf %0, %1 : vector<8x128xf32>
    %c0_3 = arith.constant 0 : index
    %c0_4 = arith.constant 0 : index
    %3 = vector.load %arg3[%c0_3, %c0_4] : memref<8x128xf32, #tpu.memory_space<vmem>>, vector<8x128xf32>
    tpu.vector_store %arg3[%c0_3, %c0_4], %2 {strides = array<i32>} : memref<8x128xf32, #tpu.memory_space<vmem>>, vector<8x128xf32>,
    return
  }
  func.func @transform_0(%arg0: i32) -> (i32, i32) {
    %c0_i32 = arith.constant 0 : i32
    %c0_i32_0 = arith.constant 0 : i32
    return %arg0, %c0_i32 : i32, i32
  }
  func.func @transform_1(%arg0: i32) -> (i32, i32) {
    %c0_i32 = arith.constant 0 : i32
    %c0_i32_0 = arith.constant 0 : i32
    %c0_i32_1 = arith.constant 0 : i32
    return %c0_i32, %c0_i32_0 : i32, i32
  }
  func.func @transform_2(%arg0: i32) -> (i32, i32) {
    %c0_i32 = arith.constant 0 : i32
    %c0_i32_0 = arith.constant 0 : i32
    return %arg0, %c0_i32 : i32, i32
  }
}

module attributes {stable_mosaic.version = 11 : i64} {
  func.func @_encoder_layer_kernel(%arg0: i32, %arg1: memref<1x9x32xf32, #tpu.memory_space<vmem>>, %arg2: memref<1x1x9xf32, #tpu.memory_space<vmem>>, %arg3: memref<1x32xf32, #tpu.memory_space<vmem>>, %arg4: memref<1x32xf32, #tpu.memory_space<vmem>>, %arg5: memref<32x96xbf16, #tpu.memory_space<vmem>>, %arg6: memref<1x96xf32, #tpu.memory_space<vmem>>, %arg7: memref<32x32xbf16, #tpu.memory_space<vmem>>, %arg8: memref<1x32xf32, #tpu.memory_space<vmem>>, %arg9: memref<1x32xf32, #tpu.memory_space<vmem>>, %arg10: memref<1x32xf32, #tpu.memory_space<vmem>>, %arg11: memref<32x128xbf16, #tpu.memory_space<vmem>>, %arg12: memref<1x128xf32, #tpu.memory_space<vmem>>, %arg13: memref<128x32xbf16, #tpu.memory_space<vmem>>, %arg14: memref<1x32xf32, #tpu.memory_space<vmem>>, %arg15: memref<1x9x32xf32, #tpu.memory_space<vmem>>, %arg16: memref<9x32xf32, #tpu.memory_space<vmem>>) attributes {dimension_semantics = [#tpu.dimension_semantics<parallel>], iteration_bounds = array<i64: 2>, scalar_prefetch = 0 : i64, scratch_operands = 1 : i64, tpu.core_type = #tpu.core_type<tc>, window_params = [{transform_indices = @transform_0, window_bounds = array<i64: 1, 9, 32>}, {transform_indices = @transform_1, window_bounds = array<i64: 1, 1, 9>}, {pipeline_mode = #tpu.pipeline_mode<synchronous>, transform_indices = @transform_2, window_bounds = array<i64: 1, 32>}, {pipeline_mode = #tpu.pipeline_mode<synchronous>, transform_indices = @transform_3, window_bounds = array<i64: 1, 32>}, {pipeline_mode = #tpu.pipeline_mode<synchronous>, transform_indices = @transform_4, window_bounds = array<i64: 32, 96>}, {pipeline_mode = #tpu.pipeline_mode<synchronous>, transform_indices = @transform_5, window_bounds = array<i64: 1, 96>}, {pipeline_mode = #tpu.pipeline_mode<synchronous>, transform_indices = @transform_6, window_bounds = array<i64: 32, 32>}, {pipeline_mode = #tpu.pipeline_mode<synchronous>, transform_indices = @transform_7, window_bounds = array<i64: 1, 32>}, {pipeline_mode = #tpu.pipeline_mode<synchronous>, transform_indices = @transform_8, window_bounds = array<i64: 1, 32>}, {pipeline_mode = #tpu.pipeline_mode<synchronous>, transform_indices = @transform_9, window_bounds = array<i64: 1, 32>}, {pipeline_mode = #tpu.pipeline_mode<synchronous>, transform_indices = @transform_10, window_bounds = array<i64: 32, 128>}, {pipeline_mode = #tpu.pipeline_mode<synchronous>, transform_indices = @transform_11, window_bounds = array<i64: 1, 128>}, {pipeline_mode = #tpu.pipeline_mode<synchronous>, transform_indices = @transform_12, window_bounds = array<i64: 128, 32>}, {pipeline_mode = #tpu.pipeline_mode<synchronous>, transform_indices = @transform_13, window_bounds = array<i64: 1, 32>}, {transform_indices = @transform_14, window_bounds = array<i64: 1, 9, 32>}]} {
    %c0 = arith.constant 0 : index
    %c0_0 = arith.constant 0 : index
    %c0_1 = arith.constant 0 : index
    %0 = vector.load %arg1[%c0, %c0_0, %c0_1] : memref<1x9x32xf32, #tpu.memory_space<vmem>>, vector<1x9x32xf32>
    %1 = vector.shape_cast %0 : vector<1x9x32xf32> to vector<9x32xf32>
    %c0_2 = arith.constant 0 : index
    %c0_3 = arith.constant 0 : index
    %2 = vector.load %arg3[%c0_2, %c0_3] : memref<1x32xf32, #tpu.memory_space<vmem>>, vector<1x32xf32>
    %c0_4 = arith.constant 0 : index
    %c0_5 = arith.constant 0 : index
    %3 = vector.load %arg4[%c0_4, %c0_5] : memref<1x32xf32, #tpu.memory_space<vmem>>, vector<1x32xf32>
    %cst = arith.constant dense<0.000000e+00> : vector<9xf32>
    %4 = vector.multi_reduction <add>, %1, %cst [1] : vector<9x32xf32> to vector<9xf32>
    %5 = vector.shape_cast %4 : vector<9xf32> to vector<9x1xf32>
    %cst_6 = arith.constant 3.200000e+01 : f32
    %6 = vector.broadcast %cst_6 : f32 to vector<9x1xf32>
    %7 = arith.divf %5, %6 : vector<9x1xf32>
    %8 = arith.mulf %1, %1 : vector<9x32xf32>
    %cst_7 = arith.constant dense<0.000000e+00> : vector<9xf32>
    %9 = vector.multi_reduction <add>, %8, %cst_7 [1] : vector<9x32xf32> to vector<9xf32>
    %10 = vector.shape_cast %9 : vector<9xf32> to vector<9x1xf32>
    %cst_8 = arith.constant 3.200000e+01 : f32
    %11 = vector.broadcast %cst_8 : f32 to vector<9x1xf32>
    %12 = arith.divf %10, %11 : vector<9x1xf32>
    %13 = arith.mulf %7, %7 : vector<9x1xf32>
    %14 = arith.subf %12, %13 : vector<9x1xf32>
    %cst_9 = arith.constant 0.000000e+00 : f32
    %15 = vector.broadcast %cst_9 : f32 to vector<9x1xf32>
    %16 = arith.maximumf %14, %15 : vector<9x1xf32>
    %17 = vector.broadcast %7 : vector<9x1xf32> to vector<9x32xf32>
    %18 = arith.subf %1, %17 : vector<9x32xf32>
    %cst_10 = arith.constant 9.99999997E-7 : f32
    %19 = vector.broadcast %cst_10 : f32 to vector<9x1xf32>
    %20 = arith.addf %16, %19 : vector<9x1xf32>
    %21 = math.rsqrt %20 : vector<9x1xf32>
    %22 = vector.broadcast %21 : vector<9x1xf32> to vector<9x32xf32>
    %23 = arith.mulf %18, %22 : vector<9x32xf32>
    %24 = vector.broadcast %2 : vector<1x32xf32> to vector<9x32xf32>
    %25 = arith.mulf %23, %24 : vector<9x32xf32>
    %26 = vector.broadcast %3 : vector<1x32xf32> to vector<9x32xf32>
    %27 = arith.addf %25, %26 : vector<9x32xf32>
    %28 = arith.truncf %27 : vector<9x32xf32> to vector<9x32xbf16>
    %c0_11 = arith.constant 0 : index
    %c0_12 = arith.constant 0 : index
    %29 = vector.load %arg5[%c0_11, %c0_12] : memref<32x96xbf16, #tpu.memory_space<vmem>>, vector<32x96xbf16>
    %cst_13 = arith.constant dense<0.000000e+00> : vector<9x96xf32>
    %30 = tpu.matmul %28, %29, %cst_13 {dimension_numbers = #tpu.dot_dimension_numbers<[1], [0], [0], [1], [0, 0, 1, 1], [], []>} : vector<9x32xbf16>, vector<32x96xbf16>, vector<9x96xf32> -> vector<9x96xf32>
    %c0_14 = arith.constant 0 : index
    %c0_15 = arith.constant 0 : index
    %31 = vector.load %arg6[%c0_14, %c0_15] : memref<1x96xf32, #tpu.memory_space<vmem>>, vector<1x96xf32>
    %32 = vector.broadcast %31 : vector<1x96xf32> to vector<9x96xf32>
    %33 = arith.addf %30, %32 : vector<9x96xf32>
    %34 = vector.extract_strided_slice %33 {offsets = [0, 0], sizes = [9, 32], strides = [1, 1]} : vector<9x96xf32> to vector<9x32xf32>
    %cst_16 = arith.constant 0.353553385 : f32
    %35 = vector.broadcast %cst_16 : f32 to vector<9x32xf32>
    %36 = arith.mulf %34, %35 : vector<9x32xf32>
    %37 = arith.truncf %36 : vector<9x32xf32> to vector<9x32xbf16>
    %38 = vector.extract_strided_slice %33 {offsets = [0, 32], sizes = [9, 32], strides = [1, 1]} : vector<9x96xf32> to vector<9x32xf32>
    %39 = arith.truncf %38 : vector<9x32xf32> to vector<9x32xbf16>
    %40 = vector.extract_strided_slice %33 {offsets = [0, 64], sizes = [9, 32], strides = [1, 1]} : vector<9x96xf32> to vector<9x32xf32>
    %41 = arith.truncf %40 : vector<9x32xf32> to vector<9x32xbf16>
    %c0_17 = arith.constant 0 : index
    %c0_18 = arith.constant 0 : index
    %c0_19 = arith.constant 0 : index
    %42 = vector.load %arg2[%c0_17, %c0_18, %c0_19] : memref<1x1x9xf32, #tpu.memory_space<vmem>>, vector<1x1x9xf32>
    %43 = vector.shape_cast %42 : vector<1x1x9xf32> to vector<1x9xf32>
    %c0_20 = arith.constant 0 : index
    %c0_21 = arith.constant 0 : index
    %44 = vector.load %arg7[%c0_20, %c0_21] : memref<32x32xbf16, #tpu.memory_space<vmem>>, vector<32x32xbf16>
    %c0_22 = arith.constant 0 : index
    %c0_23 = arith.constant 0 : index
    %45 = vector.load %arg8[%c0_22, %c0_23] : memref<1x32xf32, #tpu.memory_space<vmem>>, vector<1x32xf32>
    %46 = vector.extract_strided_slice %37 {offsets = [0, 0], sizes = [9, 8], strides = [1, 1]} : vector<9x32xbf16> to vector<9x8xbf16>
    %47 = vector.extract_strided_slice %39 {offsets = [0, 0], sizes = [9, 8], strides = [1, 1]} : vector<9x32xbf16> to vector<9x8xbf16>
    %cst_24 = arith.constant dense<0.000000e+00> : vector<9x9xf32>
    %48 = tpu.matmul %46, %47, %cst_24 {dimension_numbers = #tpu.dot_dimension_numbers<[1], [1], [0], [0], [0, 0, 1, 0], [], []>} : vector<9x8xbf16>, vector<9x8xbf16>, vector<9x9xf32> -> vector<9x9xf32>
    %49 = vector.broadcast %43 : vector<1x9xf32> to vector<9x9xf32>
    %50 = arith.addf %48, %49 : vector<9x9xf32>
    %cst_25 = arith.constant dense<0xFF800000> : vector<9xf32>
    %51 = vector.multi_reduction <maximumf>, %50, %cst_25 [1] : vector<9x9xf32> to vector<9xf32>
    %52 = vector.shape_cast %51 : vector<9xf32> to vector<9x1xf32>
    %53 = vector.broadcast %52 : vector<9x1xf32> to vector<9x9xf32>
    %54 = arith.subf %50, %53 : vector<9x9xf32>
    %55 = math.exp %54 : vector<9x9xf32>
    %cst_26 = arith.constant dense<0.000000e+00> : vector<9xf32>
    %56 = vector.multi_reduction <add>, %55, %cst_26 [1] : vector<9x9xf32> to vector<9xf32>
    %57 = vector.shape_cast %56 : vector<9xf32> to vector<9x1xf32>
    %58 = tpu.reciprocal %57 {approx = true} : vector<9x1xf32> -> vector<9x1xf32>
    %59 = vector.broadcast %58 : vector<9x1xf32> to vector<9x9xf32>
    %60 = arith.mulf %55, %59 : vector<9x9xf32>
    %61 = arith.truncf %60 : vector<9x9xf32> to vector<9x9xbf16>
    %62 = vector.extract_strided_slice %41 {offsets = [0, 0], sizes = [9, 8], strides = [1, 1]} : vector<9x32xbf16> to vector<9x8xbf16>
    %cst_27 = arith.constant dense<0.000000e+00> : vector<9x8xf32>
    %63 = tpu.matmul %61, %62, %cst_27 {dimension_numbers = #tpu.dot_dimension_numbers<[1], [0], [0], [1], [0, 0, 1, 1], [], []>} : vector<9x9xbf16>, vector<9x8xbf16>, vector<9x8xf32> -> vector<9x8xf32>
    %c0_28 = arith.constant 0 : index
    %c0_29 = arith.constant 0 : index
    %64 = vector.load %arg16[%c0_28, %c0_29] : memref<9x32xf32, #tpu.memory_space<vmem>>, vector<9x8xf32>
    tpu.vector_store %arg16[%c0_28, %c0_29], %63 {strides = array<i32>} : memref<9x32xf32, #tpu.memory_space<vmem>>, vector<9x8xf32>,
    %65 = vector.extract_strided_slice %37 {offsets = [0, 8], sizes = [9, 8], strides = [1, 1]} : vector<9x32xbf16> to vector<9x8xbf16>
    %66 = vector.extract_strided_slice %39 {offsets = [0, 8], sizes = [9, 8], strides = [1, 1]} : vector<9x32xbf16> to vector<9x8xbf16>
    %cst_30 = arith.constant dense<0.000000e+00> : vector<9x9xf32>
    %67 = tpu.matmul %65, %66, %cst_30 {dimension_numbers = #tpu.dot_dimension_numbers<[1], [1], [0], [0], [0, 0, 1, 0], [], []>} : vector<9x8xbf16>, vector<9x8xbf16>, vector<9x9xf32> -> vector<9x9xf32>
    %68 = vector.broadcast %43 : vector<1x9xf32> to vector<9x9xf32>
    %69 = arith.addf %67, %68 : vector<9x9xf32>
    %cst_31 = arith.constant dense<0xFF800000> : vector<9xf32>
    %70 = vector.multi_reduction <maximumf>, %69, %cst_31 [1] : vector<9x9xf32> to vector<9xf32>
    %71 = vector.shape_cast %70 : vector<9xf32> to vector<9x1xf32>
    %72 = vector.broadcast %71 : vector<9x1xf32> to vector<9x9xf32>
    %73 = arith.subf %69, %72 : vector<9x9xf32>
    %74 = math.exp %73 : vector<9x9xf32>
    %cst_32 = arith.constant dense<0.000000e+00> : vector<9xf32>
    %75 = vector.multi_reduction <add>, %74, %cst_32 [1] : vector<9x9xf32> to vector<9xf32>
    %76 = vector.shape_cast %75 : vector<9xf32> to vector<9x1xf32>
    %77 = tpu.reciprocal %76 {approx = true} : vector<9x1xf32> -> vector<9x1xf32>
    %78 = vector.broadcast %77 : vector<9x1xf32> to vector<9x9xf32>
    %79 = arith.mulf %74, %78 : vector<9x9xf32>
    %80 = arith.truncf %79 : vector<9x9xf32> to vector<9x9xbf16>
    %81 = vector.extract_strided_slice %41 {offsets = [0, 8], sizes = [9, 8], strides = [1, 1]} : vector<9x32xbf16> to vector<9x8xbf16>
    %cst_33 = arith.constant dense<0.000000e+00> : vector<9x8xf32>
    %82 = tpu.matmul %80, %81, %cst_33 {dimension_numbers = #tpu.dot_dimension_numbers<[1], [0], [0], [1], [0, 0, 1, 1], [], []>} : vector<9x9xbf16>, vector<9x8xbf16>, vector<9x8xf32> -> vector<9x8xf32>
    %c0_34 = arith.constant 0 : index
    %c8 = arith.constant 8 : index
    %83 = vector.load %arg16[%c0_34, %c8] : memref<9x32xf32, #tpu.memory_space<vmem>>, vector<9x8xf32>
    tpu.vector_store %arg16[%c0_34, %c8], %82 {strides = array<i32>} : memref<9x32xf32, #tpu.memory_space<vmem>>, vector<9x8xf32>,
    %84 = vector.extract_strided_slice %37 {offsets = [0, 16], sizes = [9, 8], strides = [1, 1]} : vector<9x32xbf16> to vector<9x8xbf16>
    %85 = vector.extract_strided_slice %39 {offsets = [0, 16], sizes = [9, 8], strides = [1, 1]} : vector<9x32xbf16> to vector<9x8xbf16>
    %cst_35 = arith.constant dense<0.000000e+00> : vector<9x9xf32>
    %86 = tpu.matmul %84, %85, %cst_35 {dimension_numbers = #tpu.dot_dimension_numbers<[1], [1], [0], [0], [0, 0, 1, 0], [], []>} : vector<9x8xbf16>, vector<9x8xbf16>, vector<9x9xf32> -> vector<9x9xf32>
    %87 = vector.broadcast %43 : vector<1x9xf32> to vector<9x9xf32>
    %88 = arith.addf %86, %87 : vector<9x9xf32>
    %cst_36 = arith.constant dense<0xFF800000> : vector<9xf32>
    %89 = vector.multi_reduction <maximumf>, %88, %cst_36 [1] : vector<9x9xf32> to vector<9xf32>
    %90 = vector.shape_cast %89 : vector<9xf32> to vector<9x1xf32>
    %91 = vector.broadcast %90 : vector<9x1xf32> to vector<9x9xf32>
    %92 = arith.subf %88, %91 : vector<9x9xf32>
    %93 = math.exp %92 : vector<9x9xf32>
    %cst_37 = arith.constant dense<0.000000e+00> : vector<9xf32>
    %94 = vector.multi_reduction <add>, %93, %cst_37 [1] : vector<9x9xf32> to vector<9xf32>
    %95 = vector.shape_cast %94 : vector<9xf32> to vector<9x1xf32>
    %96 = tpu.reciprocal %95 {approx = true} : vector<9x1xf32> -> vector<9x1xf32>
    %97 = vector.broadcast %96 : vector<9x1xf32> to vector<9x9xf32>
    %98 = arith.mulf %93, %97 : vector<9x9xf32>
    %99 = arith.truncf %98 : vector<9x9xf32> to vector<9x9xbf16>
    %100 = vector.extract_strided_slice %41 {offsets = [0, 16], sizes = [9, 8], strides = [1, 1]} : vector<9x32xbf16> to vector<9x8xbf16>
    %cst_38 = arith.constant dense<0.000000e+00> : vector<9x8xf32>
    %101 = tpu.matmul %99, %100, %cst_38 {dimension_numbers = #tpu.dot_dimension_numbers<[1], [0], [0], [1], [0, 0, 1, 1], [], []>} : vector<9x9xbf16>, vector<9x8xbf16>, vector<9x8xf32> -> vector<9x8xf32>
    %c0_39 = arith.constant 0 : index
    %c16 = arith.constant 16 : index
    %102 = vector.load %arg16[%c0_39, %c16] : memref<9x32xf32, #tpu.memory_space<vmem>>, vector<9x8xf32>
    tpu.vector_store %arg16[%c0_39, %c16], %101 {strides = array<i32>} : memref<9x32xf32, #tpu.memory_space<vmem>>, vector<9x8xf32>,
    %103 = vector.extract_strided_slice %37 {offsets = [0, 24], sizes = [9, 8], strides = [1, 1]} : vector<9x32xbf16> to vector<9x8xbf16>
    %104 = vector.extract_strided_slice %39 {offsets = [0, 24], sizes = [9, 8], strides = [1, 1]} : vector<9x32xbf16> to vector<9x8xbf16>
    %cst_40 = arith.constant dense<0.000000e+00> : vector<9x9xf32>
    %105 = tpu.matmul %103, %104, %cst_40 {dimension_numbers = #tpu.dot_dimension_numbers<[1], [1], [0], [0], [0, 0, 1, 0], [], []>} : vector<9x8xbf16>, vector<9x8xbf16>, vector<9x9xf32> -> vector<9x9xf32>
    %106 = vector.broadcast %43 : vector<1x9xf32> to vector<9x9xf32>
    %107 = arith.addf %105, %106 : vector<9x9xf32>
    %cst_41 = arith.constant dense<0xFF800000> : vector<9xf32>
    %108 = vector.multi_reduction <maximumf>, %107, %cst_41 [1] : vector<9x9xf32> to vector<9xf32>
    %109 = vector.shape_cast %108 : vector<9xf32> to vector<9x1xf32>
    %110 = vector.broadcast %109 : vector<9x1xf32> to vector<9x9xf32>
    %111 = arith.subf %107, %110 : vector<9x9xf32>
    %112 = math.exp %111 : vector<9x9xf32>
    %cst_42 = arith.constant dense<0.000000e+00> : vector<9xf32>
    %113 = vector.multi_reduction <add>, %112, %cst_42 [1] : vector<9x9xf32> to vector<9xf32>
    %114 = vector.shape_cast %113 : vector<9xf32> to vector<9x1xf32>
    %115 = tpu.reciprocal %114 {approx = true} : vector<9x1xf32> -> vector<9x1xf32>
    %116 = vector.broadcast %115 : vector<9x1xf32> to vector<9x9xf32>
    %117 = arith.mulf %112, %116 : vector<9x9xf32>
    %118 = arith.truncf %117 : vector<9x9xf32> to vector<9x9xbf16>
    %119 = vector.extract_strided_slice %41 {offsets = [0, 24], sizes = [9, 8], strides = [1, 1]} : vector<9x32xbf16> to vector<9x8xbf16>
    %cst_43 = arith.constant dense<0.000000e+00> : vector<9x8xf32>
    %120 = tpu.matmul %118, %119, %cst_43 {dimension_numbers = #tpu.dot_dimension_numbers<[1], [0], [0], [1], [0, 0, 1, 1], [], []>} : vector<9x9xbf16>, vector<9x8xbf16>, vector<9x8xf32> -> vector<9x8xf32>
    %c0_44 = arith.constant 0 : index
    %c24 = arith.constant 24 : index
    %121 = vector.load %arg16[%c0_44, %c24] : memref<9x32xf32, #tpu.memory_space<vmem>>, vector<9x8xf32>
    tpu.vector_store %arg16[%c0_44, %c24], %120 {strides = array<i32>} : memref<9x32xf32, #tpu.memory_space<vmem>>, vector<9x8xf32>,
    %c0_45 = arith.constant 0 : index
    %c0_46 = arith.constant 0 : index
    %122 = vector.load %arg16[%c0_45, %c0_46] : memref<9x32xf32, #tpu.memory_space<vmem>>, vector<9x32xf32>
    %123 = arith.truncf %122 : vector<9x32xf32> to vector<9x32xbf16>
    %cst_47 = arith.constant dense<0.000000e+00> : vector<9x32xf32>
    %124 = tpu.matmul %123, %44, %cst_47 {dimension_numbers = #tpu.dot_dimension_numbers<[1], [0], [0], [1], [0, 0, 1, 1], [], []>} : vector<9x32xbf16>, vector<32x32xbf16>, vector<9x32xf32> -> vector<9x32xf32>
    %125 = vector.broadcast %45 : vector<1x32xf32> to vector<9x32xf32>
    %126 = arith.addf %124, %125 : vector<9x32xf32>
    %127 = arith.addf %1, %126 : vector<9x32xf32>
    %c0_48 = arith.constant 0 : index
    %c0_49 = arith.constant 0 : index
    %128 = vector.load %arg9[%c0_48, %c0_49] : memref<1x32xf32, #tpu.memory_space<vmem>>, vector<1x32xf32>
    %c0_50 = arith.constant 0 : index
    %c0_51 = arith.constant 0 : index
    %129 = vector.load %arg10[%c0_50, %c0_51] : memref<1x32xf32, #tpu.memory_space<vmem>>, vector<1x32xf32>
    %cst_52 = arith.constant dense<0.000000e+00> : vector<9xf32>
    %130 = vector.multi_reduction <add>, %127, %cst_52 [1] : vector<9x32xf32> to vector<9xf32>
    %131 = vector.shape_cast %130 : vector<9xf32> to vector<9x1xf32>
    %cst_53 = arith.constant 3.200000e+01 : f32
    %132 = vector.broadcast %cst_53 : f32 to vector<9x1xf32>
    %133 = arith.divf %131, %132 : vector<9x1xf32>
    %134 = arith.mulf %127, %127 : vector<9x32xf32>
    %cst_54 = arith.constant dense<0.000000e+00> : vector<9xf32>
    %135 = vector.multi_reduction <add>, %134, %cst_54 [1] : vector<9x32xf32> to vector<9xf32>
    %136 = vector.shape_cast %135 : vector<9xf32> to vector<9x1xf32>
    %cst_55 = arith.constant 3.200000e+01 : f32
    %137 = vector.broadcast %cst_55 : f32 to vector<9x1xf32>
    %138 = arith.divf %136, %137 : vector<9x1xf32>
    %139 = arith.mulf %133, %133 : vector<9x1xf32>
    %140 = arith.subf %138, %139 : vector<9x1xf32>
    %cst_56 = arith.constant 0.000000e+00 : f32
    %141 = vector.broadcast %cst_56 : f32 to vector<9x1xf32>
    %142 = arith.maximumf %140, %141 : vector<9x1xf32>
    %143 = vector.broadcast %133 : vector<9x1xf32> to vector<9x32xf32>
    %144 = arith.subf %127, %143 : vector<9x32xf32>
    %cst_57 = arith.constant 9.99999997E-7 : f32
    %145 = vector.broadcast %cst_57 : f32 to vector<9x1xf32>
    %146 = arith.addf %142, %145 : vector<9x1xf32>
    %147 = math.rsqrt %146 : vector<9x1xf32>
    %148 = vector.broadcast %147 : vector<9x1xf32> to vector<9x32xf32>
    %149 = arith.mulf %144, %148 : vector<9x32xf32>
    %150 = vector.broadcast %128 : vector<1x32xf32> to vector<9x32xf32>
    %151 = arith.mulf %149, %150 : vector<9x32xf32>
    %152 = vector.broadcast %129 : vector<1x32xf32> to vector<9x32xf32>
    %153 = arith.addf %151, %152 : vector<9x32xf32>
    %c0_58 = arith.constant 0 : index
    %c0_59 = arith.constant 0 : index
    %154 = vector.load %arg11[%c0_58, %c0_59] : memref<32x128xbf16, #tpu.memory_space<vmem>>, vector<32x128xbf16>
    %c0_60 = arith.constant 0 : index
    %c0_61 = arith.constant 0 : index
    %155 = vector.load %arg12[%c0_60, %c0_61] : memref<1x128xf32, #tpu.memory_space<vmem>>, vector<1x128xf32>
    %c0_62 = arith.constant 0 : index
    %c0_63 = arith.constant 0 : index
    %156 = vector.load %arg13[%c0_62, %c0_63] : memref<128x32xbf16, #tpu.memory_space<vmem>>, vector<128x32xbf16>
    %c0_64 = arith.constant 0 : index
    %c0_65 = arith.constant 0 : index
    %157 = vector.load %arg14[%c0_64, %c0_65] : memref<1x32xf32, #tpu.memory_space<vmem>>, vector<1x32xf32>
    %158 = arith.truncf %153 : vector<9x32xf32> to vector<9x32xbf16>
    %cst_66 = arith.constant dense<0.000000e+00> : vector<9x128xf32>
    %159 = tpu.matmul %158, %154, %cst_66 {dimension_numbers = #tpu.dot_dimension_numbers<[1], [0], [0], [1], [0, 0, 1, 1], [], []>} : vector<9x32xbf16>, vector<32x128xbf16>, vector<9x128xf32> -> vector<9x128xf32>
    %160 = vector.broadcast %155 : vector<1x128xf32> to vector<9x128xf32>
    %161 = arith.addf %159, %160 : vector<9x128xf32>
    %cst_67 = arith.constant 0.000000e+00 : f32
    %162 = vector.broadcast %cst_67 : f32 to vector<9x128xf32>
    %163 = arith.maximumf %161, %162 : vector<9x128xf32>
    %164 = arith.truncf %163 : vector<9x128xf32> to vector<9x128xbf16>
    %cst_68 = arith.constant dense<0.000000e+00> : vector<9x32xf32>
    %165 = tpu.matmul %164, %156, %cst_68 {dimension_numbers = #tpu.dot_dimension_numbers<[1], [0], [0], [1], [0, 0, 1, 1], [], []>} : vector<9x128xbf16>, vector<128x32xbf16>, vector<9x32xf32> -> vector<9x32xf32>
    %166 = vector.broadcast %157 : vector<1x32xf32> to vector<9x32xf32>
    %167 = arith.addf %165, %166 : vector<9x32xf32>
    %168 = arith.addf %127, %167 : vector<9x32xf32>
    %c0_69 = arith.constant 0 : index
    %c0_70 = arith.constant 0 : index
    %c0_71 = arith.constant 0 : index
    %169 = vector.load %arg15[%c0_69, %c0_70, %c0_71] : memref<1x9x32xf32, #tpu.memory_space<vmem>>, vector<1x9x32xf32>
    %170 = vector.shape_cast %169 : vector<1x9x32xf32> to vector<9x32xf32>
    %171 = vector.shape_cast %168 : vector<9x32xf32> to vector<1x9x32xf32>
    tpu.vector_store %arg15[%c0_69, %c0_70, %c0_71], %171 {strides = array<i32>} : memref<1x9x32xf32, #tpu.memory_space<vmem>>, vector<1x9x32xf32>,
    return
  }
  func.func @transform_0(%arg0: i32) -> (i32, i32, i32) {
    %c0_i32 = arith.constant 0 : i32
    %c0_i32_0 = arith.constant 0 : i32
    %c0_i32_1 = arith.constant 0 : i32
    return %arg0, %c0_i32, %c0_i32_0 : i32, i32, i32
  }
  func.func @transform_1(%arg0: i32) -> (i32, i32, i32) {
    %c0_i32 = arith.constant 0 : i32
    %c0_i32_0 = arith.constant 0 : i32
    %c0_i32_1 = arith.constant 0 : i32
    return %arg0, %c0_i32, %c0_i32_0 : i32, i32, i32
  }
  func.func @transform_2(%arg0: i32) -> (i32, i32) {
    %c0_i32 = arith.constant 0 : i32
    %c0_i32_0 = arith.constant 0 : i32
    %c0_i32_1 = arith.constant 0 : i32
    return %c0_i32, %c0_i32_0 : i32, i32
  }
  func.func @transform_3(%arg0: i32) -> (i32, i32) {
    %c0_i32 = arith.constant 0 : i32
    %c0_i32_0 = arith.constant 0 : i32
    %c0_i32_1 = arith.constant 0 : i32
    return %c0_i32, %c0_i32_0 : i32, i32
  }
  func.func @transform_4(%arg0: i32) -> (i32, i32) {
    %c0_i32 = arith.constant 0 : i32
    %c0_i32_0 = arith.constant 0 : i32
    %c0_i32_1 = arith.constant 0 : i32
    return %c0_i32, %c0_i32_0 : i32, i32
  }
  func.func @transform_5(%arg0: i32) -> (i32, i32) {
    %c0_i32 = arith.constant 0 : i32
    %c0_i32_0 = arith.constant 0 : i32
    %c0_i32_1 = arith.constant 0 : i32
    return %c0_i32, %c0_i32_0 : i32, i32
  }
  func.func @transform_6(%arg0: i32) -> (i32, i32) {
    %c0_i32 = arith.constant 0 : i32
    %c0_i32_0 = arith.constant 0 : i32
    %c0_i32_1 = arith.constant 0 : i32
    return %c0_i32, %c0_i32_0 : i32, i32
  }
  func.func @transform_7(%arg0: i32) -> (i32, i32) {
    %c0_i32 = arith.constant 0 : i32
    %c0_i32_0 = arith.constant 0 : i32
    %c0_i32_1 = arith.constant 0 : i32
    return %c0_i32, %c0_i32_0 : i32, i32
  }
  func.func @transform_8(%arg0: i32) -> (i32, i32) {
    %c0_i32 = arith.constant 0 : i32
    %c0_i32_0 = arith.constant 0 : i32
    %c0_i32_1 = arith.constant 0 : i32
    return %c0_i32, %c0_i32_0 : i32, i32
  }
  func.func @transform_9(%arg0: i32) -> (i32, i32) {
    %c0_i32 = arith.constant 0 : i32
    %c0_i32_0 = arith.constant 0 : i32
    %c0_i32_1 = arith.constant 0 : i32
    return %c0_i32, %c0_i32_0 : i32, i32
  }
  func.func @transform_10(%arg0: i32) -> (i32, i32) {
    %c0_i32 = arith.constant 0 : i32
    %c0_i32_0 = arith.constant 0 : i32
    %c0_i32_1 = arith.constant 0 : i32
    return %c0_i32, %c0_i32_0 : i32, i32
  }
  func.func @transform_11(%arg0: i32) -> (i32, i32) {
    %c0_i32 = arith.constant 0 : i32
    %c0_i32_0 = arith.constant 0 : i32
    %c0_i32_1 = arith.constant 0 : i32
    return %c0_i32, %c0_i32_0 : i32, i32
  }
  func.func @transform_12(%arg0: i32) -> (i32, i32) {
    %c0_i32 = arith.constant 0 : i32
    %c0_i32_0 = arith.constant 0 : i32
    %c0_i32_1 = arith.constant 0 : i32
    return %c0_i32, %c0_i32_0 : i32, i32
  }
  func.func @transform_13(%arg0: i32) -> (i32, i32) {
    %c0_i32 = arith.constant 0 : i32
    %c0_i32_0 = arith.constant 0 : i32
    %c0_i32_1 = arith.constant 0 : i32
    return %c0_i32, %c0_i32_0 : i32, i32
  }
  func.func @transform_14(%arg0: i32) -> (i32, i32, i32) {
    %c0_i32 = arith.constant 0 : i32
    %c0_i32_0 = arith.constant 0 : i32
    %c0_i32_1 = arith.constant 0 : i32
    return %arg0, %c0_i32, %c0_i32_0 : i32, i32, i32
  }
}

</mosaic_0001>

<llo_original>
// kernel: tpu_custom_call.1
$region0: #{tpu_custom_call.1}
  #allocation0 [shape = 'u32[]', space=smem, size = 0x4, offset = 0x4, fixed_abs, tag = 'smem constant byte address 0x4 - core index']
  #allocation1 [shape = 'u32[144,128]{1,0:T(1,128)}', space=vmem, size = 0x12000, scoped, tag = 'internal scratch']
  %s0 = inlined_call_operand.hbm [shape: f32[16,128], index: 0, kind: input, shape index: {}]
  %s1 = inlined_call_operand.hbm [shape: f32[8,128], index: 1, kind: input, shape index: {}]
  %s2 = inlined_call_operand.hbm [shape: f32[16,128], index: 2, kind: output, shape index: {}]
  %s3 = sld [smem:[#allocation0]]
  $region49: #{tpu_custom_call.1} parent=0
    _
  %s5 = ssub.s32 1, %s3
  %s6 = scalar_select 0, %s5, %s3
  $region1: #{tpu_custom_call.1} parent=0
    #allocation2 [shape = 'u8[8192]{0}', space=vmem, size = 0x2000, scoped, tag = 'input window, operand 0']
    #allocation3 [shape = 's32[2]{0}', space=sflag, size = 0x8, scoped, tag = 'scoped memory for tpu_custom_call.1']
    #allocation4 [shape = 's32[2]{0}', space=sflag, size = 0x8, scoped, tag = 'scoped memory for tpu_custom_call.1']
    #allocation5 [shape = 'u8[4096]{0}', space=vmem, size = 0x1000, scoped, tag = 'input window, operand 1, single buffered']
    #allocation6 [shape = 's32[1]{0}', space=sflag, size = 0x4, scoped, tag = 'scoped memory for tpu_custom_call.1']
    #allocation7 [shape = 'u8[8192]{0}', space=vmem, size = 0x2000, scoped, tag = 'output window, operand 0']
    %7 = vsyncpa [#allocation3], 0
    %s8 = scalar_lea.sflag [#allocation3], 1
    %9 = vsyncpa %s8, 0
    %10 = vsyncpa [#allocation6], 0
    %11 = vsyncpa [#allocation4], 0
    %s12 = scalar_lea.sflag [#allocation4], 1
    %13 = vsyncpa %s12, 0
    loop: start=0, step=1, limit=4
    $region2: #{tpu_custom_call.1} parent=1 // loop_pre_header
      _
    $region3: #{tpu_custom_call.1} parent=1 // loop_header
      %s15 = sphi 0, %s19
      %p16 = scmp.ge.s32.totalorder %s15, 4
      %s25 = sphi 0, %s27
      %s28 = sphi 0, %s25
      %s29 = sphi 0, %s28
      %s45 = sphi 0, %s29
      %s49 = sphi 0, %s49
      %s51 = sphi 0, %s49
      %s52 = sphi 0, %s51
      %s66 = sphi 0, %s52
      %s72 = sphi 0, %s74
      %s75 = sphi 0, %s72
      %s76 = sphi 0, %s75
      %s92 = sphi 0, %s76
    $region4: #{tpu_custom_call.1} parent=1 // loop_header_branch
      %18 = sbr.rel (%p16) target = $region8
    $region5: #{tpu_custom_call.1} parent=1 // loop_body
      %s20 = ssub.s32 %s15, 1
      %s21 = ssub.s32 %s15, 2
      %s22 = sadd.s32 %s15, 1
      %s23 = ssub.s32 %s15, %s22
      %p24 = scmp.eq.s32.totalorder %s23, 0
      %s26 = sadd.s32 %s25, 1
      %s27 = scalar_select %p24, %s25, %s26
      %p30 = pneg %p24
      %p31 = scmp.eq.s32.totalorder %s15, 1
      %p32 = por %p30, %p31
      %p33 = scmp.ne.s32.totalorder %s25, %s28
      %p34 = scmp.eq.s32.totalorder %s15, 0
      %p35 = por %p33, %p34
      %p36 = scmp.ne.s32.totalorder %s25, %s28
      %p37 = scmp.eq.s32.totalorder %s20, 1
      %p38 = por %p36, %p37
      %p39 = scmp.ne.s32.totalorder %s28, %s29
      %p40 = scmp.eq.s32.totalorder %s20, 0
      %p41 = por %p39, %p40
      %p42 = scmp.ne.s32.totalorder %s28, %s29
      %p43 = scmp.eq.s32.totalorder %s21, 1
      %p44 = por %p42, %p43
      %p46 = scmp.ne.s32.totalorder %s29, %s45
      %p47 = scmp.eq.s32.totalorder %s21, 0
      %p48 = por %p46, %p47
      %s50 = sadd.s32 %s49, 1
      %p53 = scmp.eq.s32.totalorder %s15, 1
      %p54 = scmp.ne.s32.totalorder %s49, %s51
      %p55 = scmp.eq.s32.totalorder %s15, 0
      %p56 = por %p54, %p55
      %p57 = scmp.ne.s32.totalorder %s49, %s51
      %p58 = scmp.eq.s32.totalorder %s20, 1
      %p59 = por %p57, %p58
      %p60 = scmp.ne.s32.totalorder %s51, %s52
      %p61 = scmp.eq.s32.totalorder %s20, 0
      %p62 = por %p60, %p61
      %p63 = scmp.ne.s32.totalorder %s51, %s52
      %p64 = scmp.eq.s32.totalorder %s21, 1
      %p65 = por %p63, %p64
      %p67 = scmp.ne.s32.totalorder %s52, %s66
      %p68 = scmp.eq.s32.totalorder %s21, 0
      %p69 = por %p67, %p68
      %s70 = ssub.s32 %s15, %s22
      %p71 = scmp.eq.s32.totalorder %s70, 0
      %s73 = sadd.s32 %s72, 1
      %s74 = scalar_select %p71, %s72, %s73
      %p77 = pneg %p71
      %p78 = scmp.eq.s32.totalorder %s15, 1
      %p79 = por %p77, %p78
      %p80 = scmp.ne.s32.totalorder %s72, %s75
      %p81 = scmp.eq.s32.totalorder %s15, 0
      %p82 = por %p80, %p81
      %p83 = scmp.ne.s32.totalorder %s72, %s75
      %p84 = scmp.eq.s32.totalorder %s20, 1
      %p85 = por %p83, %p84
      %p86 = scmp.ne.s32.totalorder %s75, %s76
      %p87 = scmp.eq.s32.totalorder %s20, 0
      %p88 = por %p86, %p87
      %p89 = scmp.ne.s32.totalorder %s75, %s76
      %p90 = scmp.eq.s32.totalorder %s21, 1
      %p91 = por %p89, %p90
      %p93 = scmp.ne.s32.totalorder %s76, %s92
      %p94 = scmp.eq.s32.totalorder %s21, 0
      %p95 = por %p93, %p94
      %p96 = scmp.le.s32.totalorder 1, %s15
      %p97 = scmp.lt.s32.totalorder %s15, 3
      %p98 = pnand %p96, %p97
      %p99 = pneg %p98
      // Predicated region
      $region9: #{tpu_custom_call.1} parent=5 // pred_check
        _
      $region10: #{tpu_custom_call.1} parent=5 // pred_check_branch
        %101 = sbr.rel (%p98) target = $region12
      $region11: #{tpu_custom_call.1} parent=5 // pred_region
        %s102 = ssub.s32 %s15, 1
        // Predicated region
        $region13: #{tpu_custom_call.1} parent=11 // pred_check
          %p103 = pneg %p62
        $region14: #{tpu_custom_call.1} parent=11 // pred_check_branch
          %105 = sbr.rel (%p103) target = $region16
        $region15: #{tpu_custom_call.1} parent=11 // pred_region
          %s107 = ssub.s32 128, 128
          %108 = vsyncadd [#allocation6], %s107
          %s110 = sshll.u32 [#allocation5], 4
          %s111 = int_to_ptr.vmem [resolvable:$true] %s110
          %113 = dma.hbm_to_vmem [thread:$0]  %s1, 128, %s111, [#allocation6]
        $region16: #{tpu_custom_call.1} parent=11 // pred_fallthru
          _
      $region12: #{tpu_custom_call.1} parent=5 // pred_fallthru
        _
      %p114 = scmp.lt.s32.totalorder %s15, 2
      // Predicated region
      $region17: #{tpu_custom_call.1} parent=5 // pred_check
        %p115 = pneg %p114
      $region18: #{tpu_custom_call.1} parent=5 // pred_check_branch
        %117 = sbr.rel (%p115) target = $region20
      $region19: #{tpu_custom_call.1} parent=5 // pred_region
        // Predicated region
        $region21: #{tpu_custom_call.1} parent=19 // pred_check
          %p118 = pneg %p35
        $region22: #{tpu_custom_call.1} parent=19 // pred_check_branch
          %120 = sbr.rel (%p118) target = $region24
        $region23: #{tpu_custom_call.1} parent=19 // pred_region
          %s121 = sand.u32 %s25, 1
          %s122 = scalar_lea.sflag [#allocation3], %s121
          %s123 = sand.u32 %s25, 1
          %s124 = smul.addr %s123, 8
          %s125 = scalar_lea.vmem [#allocation2], %s124
          %s127 = ssub.s32 128, 128
          %128 = vsyncadd %s122, %s127
          %s129 = smul.addr %s15, 128
          %s130 = scalar_lea.hbm %s0, %s129
          %s132 = sshll.u32 %s125, 4
          %s133 = int_to_ptr.vmem [resolvable:$true] %s132
          %135 = dma.hbm_to_vmem [thread:$0]  %s130, 128, %s133, %s122
        $region24: #{tpu_custom_call.1} parent=19 // pred_fallthru
          _
      $region20: #{tpu_custom_call.1} parent=5 // pred_fallthru
        _
      %p136 = scmp.le.s32.totalorder 1, %s15
      %p137 = scmp.lt.s32.totalorder %s15, 3
      %p138 = pnand %p136, %p137
      %p139 = pneg %p138
      // Predicated region
      $region25: #{tpu_custom_call.1} parent=5 // pred_check
        _
      $region26: #{tpu_custom_call.1} parent=5 // pred_check_branch
        %141 = sbr.rel (%p138) target = $region28
      $region27: #{tpu_custom_call.1} parent=5 // pred_region
        %s142 = ssub.s32 %s15, 1
        %s143 = sand.u32 %s28, 1
        %s144 = scalar_lea.sflag [#allocation3], %s143
        %s145 = sand.u32 %s28, 1
        %s146 = smul.addr %s145, 8
        %s147 = scalar_lea.vmem [#allocation2], %s146
        // Predicated region
        $region29: #{tpu_custom_call.1} parent=27 // pred_check
          %p148 = pneg %p41
        $region30: #{tpu_custom_call.1} parent=27 // pred_check_branch
          %150 = sbr.rel (%p148) target = $region32
        $region31: #{tpu_custom_call.1} parent=27 // pred_region
          %151 = dma.done %s144, 128
        $region32: #{tpu_custom_call.1} parent=27 // pred_fallthru
          _
        // Predicated region
        $region33: #{tpu_custom_call.1} parent=27 // pred_check
          %p152 = pneg %p62
        $region34: #{tpu_custom_call.1} parent=27 // pred_check_branch
          %154 = sbr.rel (%p152) target = $region36
        $region35: #{tpu_custom_call.1} parent=27 // pred_region
          %155 = dma.done [#allocation6], 128
        $region36: #{tpu_custom_call.1} parent=27 // pred_fallthru
          _
        %s156 = sand.u32 %s28, 1
        %s157 = scalar_lea.sflag [#allocation3], %s156
        %s158 = sand.u32 %s28, 1
        %s159 = smul.addr %s158, 8
        %s160 = scalar_lea.vmem [#allocation2], %s159
        %p161 = pneg %p41
        %p162 = pneg %p38
        %p163 = pneg %p62
        %p164 = pneg %p59
        %p165 = pneg %p88
        %p166 = pneg %p85
        %s167 = sand.u32 %s75, 1
        %s168 = scalar_lea.sflag [#allocation4], %s167
        %s169 = sand.u32 %s75, 1
        %s170 = smul.addr %s169, 8
        %s171 = scalar_lea.vmem [#allocation7], %s170
        %v172 = vld [vmem:[%s147] sm:$0xff]
        %v173 = vld [vmem:[#allocation5] sm:$0xff]
        %v174 = vadd.f32 %v172, %v173
        %175 = vst [vmem:[%s171] sm:$0xff] %v174
        %s176 = sand.u32 %s75, 1
        %s177 = scalar_lea.sflag [#allocation4], %s176
        %s178 = sand.u32 %s75, 1
        %s179 = smul.addr %s178, 8
        %s180 = scalar_lea.vmem [#allocation7], %s179
        // Predicated region
        $region37: #{tpu_custom_call.1} parent=27 // pred_check
          %p181 = pneg %p85
        $region38: #{tpu_custom_call.1} parent=27 // pred_check_branch
          %183 = sbr.rel (%p181) target = $region40
        $region39: #{tpu_custom_call.1} parent=27 // pred_region
          %s185 = ssub.s32 128, 128
          %186 = vsyncadd %s177, %s185
          %s187 = smul.addr %s20, 128
          %s188 = scalar_lea.hbm %s2, %s187
          %s190 = sshll.u32 %s180, 4
          %s191 = int_to_ptr.vmem [resolvable:$true] %s190
          %193 = dma.vmem_to_hbm [thread:$0]  %s191, 128, %s188, %s177
        $region40: #{tpu_custom_call.1} parent=27 // pred_fallthru
          _
      $region28: #{tpu_custom_call.1} parent=5 // pred_fallthru
        _
      %p194 = scmp.le.s32.totalorder 2, %s15
      // Predicated region
      $region41: #{tpu_custom_call.1} parent=5 // pred_check
        %p195 = pneg %p194
      $region42: #{tpu_custom_call.1} parent=5 // pred_check_branch
        %197 = sbr.rel (%p195) target = $region44
      $region43: #{tpu_custom_call.1} parent=5 // pred_region
        %s198 = ssub.s32 %s15, 2
        // Predicated region
        $region45: #{tpu_custom_call.1} parent=43 // pred_check
          %p199 = pneg %p91
        $region46: #{tpu_custom_call.1} parent=43 // pred_check_branch
          %201 = sbr.rel (%p199) target = $region48
        $region47: #{tpu_custom_call.1} parent=43 // pred_region
          %s202 = sand.u32 %s76, 1
          %s203 = scalar_lea.sflag [#allocation4], %s202
          %s204 = sand.u32 %s76, 1
          %s205 = smul.addr %s204, 8
          %s206 = scalar_lea.vmem [#allocation7], %s205
          %207 = dma.done %s203, 128
        $region48: #{tpu_custom_call.1} parent=43 // pred_fallthru
          _
      $region44: #{tpu_custom_call.1} parent=5 // pred_fallthru
        _
    $region6: #{tpu_custom_call.1} parent=1 // loop_footer
      %s19 = sadd.s32 1, %s15
    $region7: #{tpu_custom_call.1} parent=1 // loop_footer_branch
      %14 = sbr.rel target = $region3
    $region8: #{tpu_custom_call.1} parent=1 // loop_exit
      _
    %208 = vsyncpa [#allocation3], 1
    %s209 = scalar_lea.sflag [#allocation3], 1
    %210 = vsyncpa %s209, 1
    %211 = vsyncpa [#allocation6], 1
    %212 = vsyncpa [#allocation4], 1
    %s213 = scalar_lea.sflag [#allocation4], 1
    %214 = vsyncpa %s213, 1

// kernel: tpu_custom_call.1
$region0: #{tpu_custom_call.1}
  #allocation0 [shape = 'u32[]', space=smem, size = 0x4, offset = 0x4, fixed_abs, tag = 'smem constant byte address 0x4 - core index']
  #allocation1 [shape = 'u32[144,128]{1,0:T(1,128)}', space=vmem, size = 0x12000, scoped, tag = 'internal scratch']
  #allocation2 [shape = 'f32[9,32]{1,0:T(8,128)}', space=vmem, size = 0x2000, scoped, tag = 'scratch operand']
  %s0 = inlined_call_operand.vmem [shape: f32[2,9,32], index: 0, kind: input, shape index: {}]
  %s1 = inlined_call_operand.vmem [shape: f32[2,1,9], index: 1, kind: input, shape index: {}]
  %s2 = inlined_call_operand.vmem [shape: f32[1,32], index: 2, kind: input, shape index: {}]
  %s3 = inlined_call_operand.vmem [shape: f32[1,32], index: 3, kind: input, shape index: {}]
  %s4 = inlined_call_operand.vmem [shape: bf16[32,96], index: 4, kind: input, shape index: {}]
  %s5 = inlined_call_operand.vmem [shape: f32[1,96], index: 5, kind: input, shape index: {}]
  %s6 = inlined_call_operand.vmem [shape: bf16[32,32], index: 6, kind: input, shape index: {}]
  %s7 = inlined_call_operand.vmem [shape: f32[1,32], index: 7, kind: input, shape index: {}]
  %s8 = inlined_call_operand.vmem [shape: f32[1,32], index: 8, kind: input, shape index: {}]
  %s9 = inlined_call_operand.vmem [shape: f32[1,32], index: 9, kind: input, shape index: {}]
  %s10 = inlined_call_operand.vmem [shape: bf16[32,128], index: 10, kind: input, shape index: {}]
  %s11 = inlined_call_operand.vmem [shape: f32[1,128], index: 11, kind: input, shape index: {}]
  %s12 = inlined_call_operand.vmem [shape: bf16[128,32], index: 12, kind: input, shape index: {}]
  %s13 = inlined_call_operand.vmem [shape: f32[1,32], index: 13, kind: input, shape index: {}]
  %s14 = inlined_call_operand.vmem [shape: f32[2,9,32], index: 14, kind: output, shape index: {}]
  %s15 = sld [smem:[#allocation0]]
  $region89: #{tpu_custom_call.1} parent=0
    _
  %s17 = ssub.s32 1, %s15
  %s18 = scalar_select 0, %s17, %s15
  loop: start=0, step=1, limit=4
  $region2: #{tpu_custom_call.1} parent=0 // loop_pre_header
    _
  $region3: #{tpu_custom_call.1} parent=0 // loop_header
    %s20 = sphi 0, %s24
    %p21 = scmp.ge.s32.totalorder %s20, 4
    %s30 = sphi 0, %s32
    %s33 = sphi 0, %s30
    %s34 = sphi 0, %s33
    %s50 = sphi 0, %s34
    %s56 = sphi 0, %s58
    %s59 = sphi 0, %s56
    %s60 = sphi 0, %s59
    %s76 = sphi 0, %s60
    %s80 = sphi 0, %s80
    %s82 = sphi 0, %s80
    %s83 = sphi 0, %s82
    %s97 = sphi 0, %s83
    %s101 = sphi 0, %s101
    %s103 = sphi 0, %s101
    %s104 = sphi 0, %s103
    %s118 = sphi 0, %s104
    %s122 = sphi 0, %s122
    %s124 = sphi 0, %s122
    %s125 = sphi 0, %s124
    %s139 = sphi 0, %s125
    %s143 = sphi 0, %s143
    %s145 = sphi 0, %s143
    %s146 = sphi 0, %s145
    %s160 = sphi 0, %s146
    %s164 = sphi 0, %s164
    %s166 = sphi 0, %s164
    %s167 = sphi 0, %s166
    %s181 = sphi 0, %s167
    %s185 = sphi 0, %s185
    %s187 = sphi 0, %s185
    %s188 = sphi 0, %s187
    %s202 = sphi 0, %s188
    %s206 = sphi 0, %s206
    %s208 = sphi 0, %s206
    %s209 = sphi 0, %s208
    %s223 = sphi 0, %s209
    %s227 = sphi 0, %s227
    %s229 = sphi 0, %s227
    %s230 = sphi 0, %s229
    %s244 = sphi 0, %s230
    %s248 = sphi 0, %s248
    %s250 = sphi 0, %s248
    %s251 = sphi 0, %s250
    %s265 = sphi 0, %s251
    %s269 = sphi 0, %s269
    %s271 = sphi 0, %s269
    %s272 = sphi 0, %s271
    %s286 = sphi 0, %s272
    %s290 = sphi 0, %s290
    %s292 = sphi 0, %s290
    %s293 = sphi 0, %s292
    %s307 = sphi 0, %s293
    %s311 = sphi 0, %s311
    %s313 = sphi 0, %s311
    %s314 = sphi 0, %s313
    %s328 = sphi 0, %s314
    %s334 = sphi 0, %s336
    %s337 = sphi 0, %s334
    %s338 = sphi 0, %s337
    %s354 = sphi 0, %s338
  $region4: #{tpu_custom_call.1} parent=0 // loop_header_branch
    %23 = sbr.rel (%p21) target = $region8
  $region5: #{tpu_custom_call.1} parent=0 // loop_body
    %s25 = ssub.s32 %s20, 1
    %s26 = ssub.s32 %s20, 2
    %s27 = sadd.s32 %s20, 1
    %s28 = ssub.s32 %s20, %s27
    %p29 = scmp.eq.s32.totalorder %s28, 0
    %s31 = sadd.s32 %s30, 1
    %s32 = scalar_select %p29, %s30, %s31
    %p35 = pneg %p29
    %p36 = scmp.eq.s32.totalorder %s20, 1
    %p37 = por %p35, %p36
    %p38 = scmp.ne.s32.totalorder %s30, %s33
    %p39 = scmp.eq.s32.totalorder %s20, 0
    %p40 = por %p38, %p39
    %p41 = scmp.ne.s32.totalorder %s30, %s33
    %p42 = scmp.eq.s32.totalorder %s25, 1
    %p43 = por %p41, %p42
    %p44 = scmp.ne.s32.totalorder %s33, %s34
    %p45 = scmp.eq.s32.totalorder %s25, 0
    %p46 = por %p44, %p45
    %p47 = scmp.ne.s32.totalorder %s33, %s34
    %p48 = scmp.eq.s32.totalorder %s26, 1
    %p49 = por %p47, %p48
    %p51 = scmp.ne.s32.totalorder %s34, %s50
    %p52 = scmp.eq.s32.totalorder %s26, 0
    %p53 = por %p51, %p52
    %s54 = ssub.s32 %s20, %s27
    %p55 = scmp.eq.s32.totalorder %s54, 0
    %s57 = sadd.s32 %s56, 1
    %s58 = scalar_select %p55, %s56, %s57
    %p61 = pneg %p55
    %p62 = scmp.eq.s32.totalorder %s20, 1
    %p63 = por %p61, %p62
    %p64 = scmp.ne.s32.totalorder %s56, %s59
    %p65 = scmp.eq.s32.totalorder %s20, 0
    %p66 = por %p64, %p65
    %p67 = scmp.ne.s32.totalorder %s56, %s59
    %p68 = scmp.eq.s32.totalorder %s25, 1
    %p69 = por %p67, %p68
    %p70 = scmp.ne.s32.totalorder %s59, %s60
    %p71 = scmp.eq.s32.totalorder %s25, 0
    %p72 = por %p70, %p71
    %p73 = scmp.ne.s32.totalorder %s59, %s60
    %p74 = scmp.eq.s32.totalorder %s26, 1
    %p75 = por %p73, %p74
    %p77 = scmp.ne.s32.totalorder %s60, %s76
    %p78 = scmp.eq.s32.totalorder %s26, 0
    %p79 = por %p77, %p78
    %s81 = sadd.s32 %s80, 1
    %p84 = scmp.eq.s32.totalorder %s20, 1
    %p85 = scmp.ne.s32.totalorder %s80, %s82
    %p86 = scmp.eq.s32.totalorder %s20, 0
    %p87 = por %p85, %p86
    %p88 = scmp.ne.s32.totalorder %s80, %s82
    %p89 = scmp.eq.s32.totalorder %s25, 1
    %p90 = por %p88, %p89
    %p91 = scmp.ne.s32.totalorder %s82, %s83
    %p92 = scmp.eq.s32.totalorder %s25, 0
    %p93 = por %p91, %p92
    %p94 = scmp.ne.s32.totalorder %s82, %s83
    %p95 = scmp.eq.s32.totalorder %s26, 1
    %p96 = por %p94, %p95
    %p98 = scmp.ne.s32.totalorder %s83, %s97
    %p99 = scmp.eq.s32.totalorder %s26, 0
    %p100 = por %p98, %p99
    %s102 = sadd.s32 %s101, 1
    %p105 = scmp.eq.s32.totalorder %s20, 1
    %p106 = scmp.ne.s32.totalorder %s101, %s103
    %p107 = scmp.eq.s32.totalorder %s20, 0
    %p108 = por %p106, %p107
    %p109 = scmp.ne.s32.totalorder %s101, %s103
    %p110 = scmp.eq.s32.totalorder %s25, 1
    %p111 = por %p109, %p110
    %p112 = scmp.ne.s32.totalorder %s103, %s104
    %p113 = scmp.eq.s32.totalorder %s25, 0
    %p114 = por %p112, %p113
    %p115 = scmp.ne.s32.totalorder %s103, %s104
    %p116 = scmp.eq.s32.totalorder %s26, 1
    %p117 = por %p115, %p116
    %p119 = scmp.ne.s32.totalorder %s104, %s118
    %p120 = scmp.eq.s32.totalorder %s26, 0
    %p121 = por %p119, %p120
    %s123 = sadd.s32 %s122, 1
    %p126 = scmp.eq.s32.totalorder %s20, 1
    %p127 = scmp.ne.s32.totalorder %s122, %s124
    %p128 = scmp.eq.s32.totalorder %s20, 0
    %p129 = por %p127, %p128
    %p130 = scmp.ne.s32.totalorder %s122, %s124
    %p131 = scmp.eq.s32.totalorder %s25, 1
    %p132 = por %p130, %p131
    %p133 = scmp.ne.s32.totalorder %s124, %s125
    %p134 = scmp.eq.s32.totalorder %s25, 0
    %p135 = por %p133, %p134
    %p136 = scmp.ne.s32.totalorder %s124, %s125
    %p137 = scmp.eq.s32.totalorder %s26, 1
    %p138 = por %p136, %p137
    %p140 = scmp.ne.s32.totalorder %s125, %s139
    %p141 = scmp.eq.s32.totalorder %s26, 0
    %p142 = por %p140, %p141
    %s144 = sadd.s32 %s143, 1
    %p147 = scmp.eq.s32.totalorder %s20, 1
    %p148 = scmp.ne.s32.totalorder %s143, %s145
    %p149 = scmp.eq.s32.totalorder %s20, 0
    %p150 = por %p148, %p149
    %p151 = scmp.ne.s32.totalorder %s143, %s145
    %p152 = scmp.eq.s32.totalorder %s25, 1
    %p153 = por %p151, %p152
    %p154 = scmp.ne.s32.totalorder %s145, %s146
    %p155 = scmp.eq.s32.totalorder %s25, 0
    %p156 = por %p154, %p155
    %p157 = scmp.ne.s32.totalorder %s145, %s146
    %p158 = scmp.eq.s32.totalorder %s26, 1
    %p159 = por %p157, %p158
    %p161 = scmp.ne.s32.totalorder %s146, %s160
    %p162 = scmp.eq.s32.totalorder %s26, 0
    %p163 = por %p161, %p162
    %s165 = sadd.s32 %s164, 1
    %p168 = scmp.eq.s32.totalorder %s20, 1
    %p169 = scmp.ne.s32.totalorder %s164, %s166
    %p170 = scmp.eq.s32.totalorder %s20, 0
    %p171 = por %p169, %p170
    %p172 = scmp.ne.s32.totalorder %s164, %s166
    %p173 = scmp.eq.s32.totalorder %s25, 1
    %p174 = por %p172, %p173
    %p175 = scmp.ne.s32.totalorder %s166, %s167
    %p176 = scmp.eq.s32.totalorder %s25, 0
    %p177 = por %p175, %p176
    %p178 = scmp.ne.s32.totalorder %s166, %s167
    %p179 = scmp.eq.s32.totalorder %s26, 1
    %p180 = por %p178, %p179
    %p182 = scmp.ne.s32.totalorder %s167, %s181
    %p183 = scmp.eq.s32.totalorder %s26, 0
    %p184 = por %p182, %p183
    %s186 = sadd.s32 %s185, 1
    %p189 = scmp.eq.s32.totalorder %s20, 1
    %p190 = scmp.ne.s32.totalorder %s185, %s187
    %p191 = scmp.eq.s32.totalorder %s20, 0
    %p192 = por %p190, %p191
    %p193 = scmp.ne.s32.totalorder %s185, %s187
    %p194 = scmp.eq.s32.totalorder %s25, 1
    %p195 = por %p193, %p194
    %p196 = scmp.ne.s32.totalorder %s187, %s188
    %p197 = scmp.eq.s32.totalorder %s25, 0
    %p198 = por %p196, %p197
    %p199 = scmp.ne.s32.totalorder %s187, %s188
    %p200 = scmp.eq.s32.totalorder %s26, 1
    %p201 = por %p199, %p200
    %p203 = scmp.ne.s32.totalorder %s188, %s202
    %p204 = scmp.eq.s32.totalorder %s26, 0
    %p205 = por %p203, %p204
    %s207 = sadd.s32 %s206, 1
    %p210 = scmp.eq.s32.totalorder %s20, 1
    %p211 = scmp.ne.s32.totalorder %s206, %s208
    %p212 = scmp.eq.s32.totalorder %s20, 0
    %p213 = por %p211, %p212
    %p214 = scmp.ne.s32.totalorder %s206, %s208
    %p215 = scmp.eq.s32.totalorder %s25, 1
    %p216 = por %p214, %p215
    %p217 = scmp.ne.s32.totalorder %s208, %s209
    %p218 = scmp.eq.s32.totalorder %s25, 0
    %p219 = por %p217, %p218
    %p220 = scmp.ne.s32.totalorder %s208, %s209
    %p221 = scmp.eq.s32.totalorder %s26, 1
    %p222 = por %p220, %p221
    %p224 = scmp.ne.s32.totalorder %s209, %s223
    %p225 = scmp.eq.s32.totalorder %s26, 0
    %p226 = por %p224, %p225
    %s228 = sadd.s32 %s227, 1
    %p231 = scmp.eq.s32.totalorder %s20, 1
    %p232 = scmp.ne.s32.totalorder %s227, %s229
    %p233 = scmp.eq.s32.totalorder %s20, 0
    %p234 = por %p232, %p233
    %p235 = scmp.ne.s32.totalorder %s227, %s229
    %p236 = scmp.eq.s32.totalorder %s25, 1
    %p237 = por %p235, %p236
    %p238 = scmp.ne.s32.totalorder %s229, %s230
    %p239 = scmp.eq.s32.totalorder %s25, 0
    %p240 = por %p238, %p239
    %p241 = scmp.ne.s32.totalorder %s229, %s230
    %p242 = scmp.eq.s32.totalorder %s26, 1
    %p243 = por %p241, %p242
    %p245 = scmp.ne.s32.totalorder %s230, %s244
    %p246 = scmp.eq.s32.totalorder %s26, 0
    %p247 = por %p245, %p246
    %s249 = sadd.s32 %s248, 1
    %p252 = scmp.eq.s32.totalorder %s20, 1
    %p253 = scmp.ne.s32.totalorder %s248, %s250
    %p254 = scmp.eq.s32.totalorder %s20, 0
    %p255 = por %p253, %p254
    %p256 = scmp.ne.s32.totalorder %s248, %s250
    %p257 = scmp.eq.s32.totalorder %s25, 1
    %p258 = por %p256, %p257
    %p259 = scmp.ne.s32.totalorder %s250, %s251
    %p260 = scmp.eq.s32.totalorder %s25, 0
    %p261 = por %p259, %p260
    %p262 = scmp.ne.s32.totalorder %s250, %s251
    %p263 = scmp.eq.s32.totalorder %s26, 1
    %p264 = por %p262, %p263
    %p266 = scmp.ne.s32.totalorder %s251, %s265
    %p267 = scmp.eq.s32.totalorder %s26, 0
    %p268 = por %p266, %p267
    %s270 = sadd.s32 %s269, 1
    %p273 = scmp.eq.s32.totalorder %s20, 1
    %p274 = scmp.ne.s32.totalorder %s269, %s271
    %p275 = scmp.eq.s32.totalorder %s20, 0
    %p276 = por %p274, %p275
    %p277 = scmp.ne.s32.totalorder %s269, %s271
    %p278 = scmp.eq.s32.totalorder %s25, 1
    %p279 = por %p277, %p278
    %p280 = scmp.ne.s32.totalorder %s271, %s272
    %p281 = scmp.eq.s32.totalorder %s25, 0
    %p282 = por %p280, %p281
    %p283 = scmp.ne.s32.totalorder %s271, %s272
    %p284 = scmp.eq.s32.totalorder %s26, 1
    %p285 = por %p283, %p284
    %p287 = scmp.ne.s32.totalorder %s272, %s286
    %p288 = scmp.eq.s32.totalorder %s26, 0
    %p289 = por %p287, %p288
    %s291 = sadd.s32 %s290, 1
    %p294 = scmp.eq.s32.totalorder %s20, 1
    %p295 = scmp.ne.s32.totalorder %s290, %s292
    %p296 = scmp.eq.s32.totalorder %s20, 0
    %p297 = por %p295, %p296
    %p298 = scmp.ne.s32.totalorder %s290, %s292
    %p299 = scmp.eq.s32.totalorder %s25, 1
    %p300 = por %p298, %p299
    %p301 = scmp.ne.s32.totalorder %s292, %s293
    %p302 = scmp.eq.s32.totalorder %s25, 0
    %p303 = por %p301, %p302
    %p304 = scmp.ne.s32.totalorder %s292, %s293
    %p305 = scmp.eq.s32.totalorder %s26, 1
    %p306 = por %p304, %p305
    %p308 = scmp.ne.s32.totalorder %s293, %s307
    %p309 = scmp.eq.s32.totalorder %s26, 0
    %p310 = por %p308, %p309
    %s312 = sadd.s32 %s311, 1
    %p315 = scmp.eq.s32.totalorder %s20, 1
    %p316 = scmp.ne.s32.totalorder %s311, %s313
    %p317 = scmp.eq.s32.totalorder %s20, 0
    %p318 = por %p316, %p317
    %p319 = scmp.ne.s32.totalorder %s311, %s313
    %p320 = scmp.eq.s32.totalorder %s25, 1
    %p321 = por %p319, %p320
    %p322 = scmp.ne.s32.totalorder %s313, %s314
    %p323 = scmp.eq.s32.totalorder %s25, 0
    %p324 = por %p322, %p323
    %p325 = scmp.ne.s32.totalorder %s313, %s314
    %p326 = scmp.eq.s32.totalorder %s26, 1
    %p327 = por %p325, %p326
    %p329 = scmp.ne.s32.totalorder %s314, %s328
    %p330 = scmp.eq.s32.totalorder %s26, 0
    %p331 = por %p329, %p330
    %s332 = ssub.s32 %s20, %s27
    %p333 = scmp.eq.s32.totalorder %s332, 0
    %s335 = sadd.s32 %s334, 1
    %s336 = scalar_select %p333, %s334, %s335
    %p339 = pneg %p333
    %p340 = scmp.eq.s32.totalorder %s20, 1
    %p341 = por %p339, %p340
    %p342 = scmp.ne.s32.totalorder %s334, %s337
    %p343 = scmp.eq.s32.totalorder %s20, 0
    %p344 = por %p342, %p343
    %p345 = scmp.ne.s32.totalorder %s334, %s337
    %p346 = scmp.eq.s32.totalorder %s25, 1
    %p347 = por %p345, %p346
    %p348 = scmp.ne.s32.totalorder %s337, %s338
    %p349 = scmp.eq.s32.totalorder %s25, 0
    %p350 = por %p348, %p349
    %p351 = scmp.ne.s32.totalorder %s337, %s338
    %p352 = scmp.eq.s32.totalorder %s26, 1
    %p353 = por %p351, %p352
    %p355 = scmp.ne.s32.totalorder %s338, %s354
    %p356 = scmp.eq.s32.totalorder %s26, 0
    %p357 = por %p355, %p356
    %p358 = scmp.le.s32.totalorder 1, %s20
    %p359 = scmp.lt.s32.totalorder %s20, 3
    %p360 = pnand %p358, %p359
    %p361 = pneg %p360
    // Predicated region
    $region9: #{tpu_custom_call.1} parent=5 // pred_check
      _
    $region10: #{tpu_custom_call.1} parent=5 // pred_check_branch
      %363 = sbr.rel (%p360) target = $region12
    $region11: #{tpu_custom_call.1} parent=5 // pred_region
      %s364 = ssub.s32 %s20, 1
      // Predicated region
      $region13: #{tpu_custom_call.1} parent=11 // pred_check
        %p365 = pneg %p93
      $region14: #{tpu_custom_call.1} parent=11 // pred_check_branch
        %367 = sbr.rel (%p365) target = $region16
      $region15: #{tpu_custom_call.1} parent=11 // pred_region
        _
      $region16: #{tpu_custom_call.1} parent=11 // pred_fallthru
        _
      // Predicated region
      $region17: #{tpu_custom_call.1} parent=11 // pred_check
        %p368 = pneg %p114
      $region18: #{tpu_custom_call.1} parent=11 // pred_check_branch
        %370 = sbr.rel (%p368) target = $region20
      $region19: #{tpu_custom_call.1} parent=11 // pred_region
        _
      $region20: #{tpu_custom_call.1} parent=11 // pred_fallthru
        _
      // Predicated region
      $region21: #{tpu_custom_call.1} parent=11 // pred_check
        %p371 = pneg %p135
      $region22: #{tpu_custom_call.1} parent=11 // pred_check_branch
        %373 = sbr.rel (%p371) target = $region24
      $region23: #{tpu_custom_call.1} parent=11 // pred_region
        _
      $region24: #{tpu_custom_call.1} parent=11 // pred_fallthru
        _
      // Predicated region
      $region25: #{tpu_custom_call.1} parent=11 // pred_check
        %p374 = pneg %p156
      $region26: #{tpu_custom_call.1} parent=11 // pred_check_branch
        %376 = sbr.rel (%p374) target = $region28
      $region27: #{tpu_custom_call.1} parent=11 // pred_region
        _
      $region28: #{tpu_custom_call.1} parent=11 // pred_fallthru
        _
      // Predicated region
      $region29: #{tpu_custom_call.1} parent=11 // pred_check
        %p377 = pneg %p177
      $region30: #{tpu_custom_call.1} parent=11 // pred_check_branch
        %379 = sbr.rel (%p377) target = $region32
      $region31: #{tpu_custom_call.1} parent=11 // pred_region
        _
      $region32: #{tpu_custom_call.1} parent=11 // pred_fallthru
        _
      // Predicated region
      $region33: #{tpu_custom_call.1} parent=11 // pred_check
        %p380 = pneg %p198
      $region34: #{tpu_custom_call.1} parent=11 // pred_check_branch
        %382 = sbr.rel (%p380) target = $region36
      $region35: #{tpu_custom_call.1} parent=11 // pred_region
        _
      $region36: #{tpu_custom_call.1} parent=11 // pred_fallthru
        _
      // Predicated region
      $region37: #{tpu_custom_call.1} parent=11 // pred_check
        %p383 = pneg %p219
      $region38: #{tpu_custom_call.1} parent=11 // pred_check_branch
        %385 = sbr.rel (%p383) target = $region40
      $region39: #{tpu_custom_call.1} parent=11 // pred_region
        _
      $region40: #{tpu_custom_call.1} parent=11 // pred_fallthru
        _
      // Predicated region
      $region41: #{tpu_custom_call.1} parent=11 // pred_check
        %p386 = pneg %p240
      $region42: #{tpu_custom_call.1} parent=11 // pred_check_branch
        %388 = sbr.rel (%p386) target = $region44
      $region43: #{tpu_custom_call.1} parent=11 // pred_region
        _
      $region44: #{tpu_custom_call.1} parent=11 // pred_fallthru
        _
      // Predicated region
      $region45: #{tpu_custom_call.1} parent=11 // pred_check
        %p389 = pneg %p261
      $region46: #{tpu_custom_call.1} parent=11 // pred_check_branch
        %391 = sbr.rel (%p389) target = $region48
      $region47: #{tpu_custom_call.1} parent=11 // pred_region
        _
      $region48: #{tpu_custom_call.1} parent=11 // pred_fallthru
        _
      // Predicated region
      $region49: #{tpu_custom_call.1} parent=11 // pred_check
        %p392 = pneg %p282
      $region50: #{tpu_custom_call.1} parent=11 // pred_check_branch
        %394 = sbr.rel (%p392) target = $region52
      $region51: #{tpu_custom_call.1} parent=11 // pred_region
        _
      $region52: #{tpu_custom_call.1} parent=11 // pred_fallthru
        _
      // Predicated region
      $region53: #{tpu_custom_call.1} parent=11 // pred_check
        %p395 = pneg %p303
      $region54: #{tpu_custom_call.1} parent=11 // pred_check_branch
        %397 = sbr.rel (%p395) target = $region56
      $region55: #{tpu_custom_call.1} parent=11 // pred_region
        _
      $region56: #{tpu_custom_call.1} parent=11 // pred_fallthru
        _
      // Predicated region
      $region57: #{tpu_custom_call.1} parent=11 // pred_check
        %p398 = pneg %p324
      $region58: #{tpu_custom_call.1} parent=11 // pred_check_branch
        %400 = sbr.rel (%p398) target = $region60
      $region59: #{tpu_custom_call.1} parent=11 // pred_region
        _
      $region60: #{tpu_custom_call.1} parent=11 // pred_fallthru
        _
    $region12: #{tpu_custom_call.1} parent=5 // pred_fallthru
      _
    %p401 = scmp.lt.s32.totalorder %s20, 2
    // Predicated region
    $region61: #{tpu_custom_call.1} parent=5 // pred_check
      %p402 = pneg %p401
    $region62: #{tpu_custom_call.1} parent=5 // pred_check_branch
      %404 = sbr.rel (%p402) target = $region64
    $region63: #{tpu_custom_call.1} parent=5 // pred_region
      // Predicated region
      $region65: #{tpu_custom_call.1} parent=63 // pred_check
        %p405 = pneg %p40
      $region66: #{tpu_custom_call.1} parent=63 // pred_check_branch
        %407 = sbr.rel (%p405) target = $region68
      $region67: #{tpu_custom_call.1} parent=63 // pred_region
        %p408 = scmp.lt.s32.totalorder %s20, 1
        %s409 = scalar_select %p408, %s20, 1
        %s410 = smul.addr %s409, 2
        %s411 = smul.addr %s410, 8
        %s412 = scalar_lea.vmem %s0, %s411
      $region68: #{tpu_custom_call.1} parent=63 // pred_fallthru
        _
      // Predicated region
      $region69: #{tpu_custom_call.1} parent=63 // pred_check
        %p413 = pneg %p66
      $region70: #{tpu_custom_call.1} parent=63 // pred_check_branch
        %415 = sbr.rel (%p413) target = $region72
      $region71: #{tpu_custom_call.1} parent=63 // pred_region
        %p416 = scmp.lt.s32.totalorder %s20, 1
        %s417 = scalar_select %p416, %s20, 1
        %s418 = scalar_lea.vmem %s1, %s417
      $region72: #{tpu_custom_call.1} parent=63 // pred_fallthru
        _
    $region64: #{tpu_custom_call.1} parent=5 // pred_fallthru
      _
    %p419 = scmp.le.s32.totalorder 1, %s20
    %p420 = scmp.lt.s32.totalorder %s20, 3
    %p421 = pnand %p419, %p420
    %p422 = pneg %p421
    // Predicated region
    $region73: #{tpu_custom_call.1} parent=5 // pred_check
      _
    $region74: #{tpu_custom_call.1} parent=5 // pred_check_branch
      %424 = sbr.rel (%p421) target = $region76
    $region75: #{tpu_custom_call.1} parent=5 // pred_region
      %s425 = ssub.s32 %s20, 1
      %p426 = scmp.lt.s32.totalorder %s25, 1
      %s427 = scalar_select %p426, %s25, 1
      %s428 = smul.addr %s427, 2
      %s429 = smul.addr %s428, 8
      %s430 = scalar_lea.vmem %s0, %s429
      %p431 = pneg %p46
      %p432 = pneg %p43
      %p433 = scmp.lt.s32.totalorder %s25, 1
      %s434 = scalar_select %p433, %s25, 1
      %s435 = scalar_lea.vmem %s1, %s434
      %p436 = pneg %p72
      %p437 = pneg %p69
      %p438 = pneg %p93
      %p439 = pneg %p90
      %p440 = pneg %p114
      %p441 = pneg %p111
      %p442 = pneg %p135
      %p443 = pneg %p132
      %p444 = pneg %p156
      %p445 = pneg %p153
      %p446 = pneg %p177
      %p447 = pneg %p174
      %p448 = pneg %p198
      %p449 = pneg %p195
      %p450 = pneg %p219
      %p451 = pneg %p216
      %p452 = pneg %p240
      %p453 = pneg %p237
      %p454 = pneg %p261
      %p455 = pneg %p258
      %p456 = pneg %p282
      %p457 = pneg %p279
      %p458 = pneg %p303
      %p459 = pneg %p300
      %p460 = pneg %p324
      %p461 = pneg %p321
      %p462 = pneg %p350
      %p463 = pneg %p347
      %p464 = scmp.lt.s32.totalorder %s25, 1
      %s465 = scalar_select %p464, %s25, 1
      %s466 = smul.addr %s465, 2
      %s467 = smul.addr %s466, 8
      %s468 = scalar_lea.vmem %s14, %s467
      %p469 = scmp.lt.s32.totalorder %s25, 1
      %s470 = scalar_select %p469, %s25, 1
      %s471 = smul.addr %s470, 2
      %s472 = smul.addr %s471, 8
      %s473 = scalar_lea.vmem %s0, %s472
      %p474 = scmp.lt.s32.totalorder %s25, 1
      %s475 = scalar_select %p474, %s25, 1
      %s476 = scalar_lea.vmem %s1, %s475
      %p477 = scmp.lt.s32.totalorder %s25, 1
      %s478 = scalar_select %p477, %s25, 1
      %s479 = smul.addr %s478, 2
      %s480 = smul.addr %s479, 8
      %s481 = scalar_lea.vmem %s14, %s480
      %v483 = vld [vmem:[%s473] sm:$0xff]
      %v484 = vld [vmem:[%s473 + $0x8] sm:$0x1]
      %v485 = vld [vmem:[%s2] sm:$0x1]
      %v486 = vld [vmem:[%s3] sm:$0x1]
      %vm487 = vcmask 261120
      %v488 = vsel %vm487, %v483, 0.0
      %489 = vadd.xlane.f32.xlu0 %v488
      %v490 = vpop.xlane.xlu0 %489
      %vm491 = vcmask 253952
      %v492 = vsel %vm491, %v484, 0.0
      %493 = vadd.xlane.f32.xlu0 %v492
      %v494 = vpop.xlane.xlu0 %493
      %v495 = vrcp.pop 32.0
      %v496 = vmul.f32 %v490, %v495
      %v497 = vmul.f32 %v494, %v495
      %v498 = vmul.f32 %v483, %v483
      %v499 = vmul.f32 %v484, %v484
      %v500 = vsel %vm487, %v498, 0.0
      %501 = vadd.xlane.f32.xlu0 %v500
      %v502 = vpop.xlane.xlu0 %501
      %v503 = vsel %vm491, %v499, 0.0
      %504 = vadd.xlane.f32.xlu0 %v503
      %v505 = vpop.xlane.xlu0 %504
      %v506 = vmul.f32 %v502, %v495
      %v507 = vmul.f32 %v505, %v495
      %v508 = vmul.f32 %v496, %v496
      %v509 = vmul.f32 %v497, %v497
      %v510 = vsub.f32 %v506, %v508
      %v511 = vsub.f32 %v507, %v509
      %v512 = vmax.f32 %v510, 0.0
      %v513 = vmax.f32 %v511, 0.0
      %v514 = vsub.f32 %v483, %v496
      %v515 = vsub.f32 %v484, %v497
      %v516 = vadd.f32 %v512, 1e-06
      %v517 = vadd.f32 %v513, 1e-06
      %v518 = vrsqrt.pop %v516
      %v519 = vrsqrt.pop %v517
      %v520 = vmul.f32 %v514, %v518
      %v521 = vmul.f32 %v515, %v519
      %v523 = vlaneseq
      %v524 = vshrl.u32 %v523, 7
      %v525 = vsub.s32 0, %v524
      %v526 = vrot.slane %v485, %v525
      %v528 = vmul.f32 %v520, %v526
      %v529 = vmul.f32 %v521, %v526
      %v531 = vlaneseq
      %v532 = vshrl.u32 %v531, 7
      %v533 = vsub.s32 0, %v532
      %v534 = vrot.slane %v486, %v533
      %v536 = vadd.f32 %v528, %v534
      %v537 = vadd.f32 %v529, %v534
      %v538 = vpack.c.bf16 %v537, %v536
      %v539 = vld [vmem:[%s4] sm:$0xf]
      %v540 = vld [vmem:[%s4 + $0x4] sm:$0xf]
      %v541 = vld [vmem:[%s4 + $0x8] sm:$0xf]
      %v542 = vld [vmem:[%s4 + $0xc] sm:$0xf]
      %v543 = vld [vmem:[%s5] sm:$0x1]
      %v545 = vlaneseq
      %v546 = vshrl.u32 %v545, 7
      %v547 = vsub.s32 0, %v546
      %v548 = vrot.slane %v543, %v547
      %v554 = vunpack.c.l.b16 %v539
      %v555 = vunpack.c.l.b16 %v540
      %v556 = vunpack.c.l.b16 %v541
      %v557 = vunpack.c.l.b16 %v542
      %v558 = vpack.c.b16 %v555, %v554
      %v559 = vpack.c.b16 %v557, %v556
      %v563 = vsel %vm487, %v538, 0
      %565 = vmatprep.subr.bf16.mxu0 0
      %566 = vmatpush1.bf16.msra.mxu0 %v558
      %567 = vmatprep.subr.bf16.mxu0 0
      %568 = vmatpush1.bf16.msra.mxu0 %v559
      %569 = vmatprep.subr.bf16.mxu0 0
      %570 = vmatpush1.bf16.msra.mxu0 0
      %571 = vmatprep.subr.bf16.mxu0 0
      %572 = vmatpush1.bf16.msra.mxu0 0
      %573 = vmatprep.subr.bf16.mxu0 0
      %574 = vmatpush1.bf16.msra.mxu0 0
      %575 = vmatprep.subr.bf16.mxu0 0
      %576 = vmatpush1.bf16.msra.mxu0 0
      %577 = vmatprep.subr.bf16.mxu0 0
      %578 = vmatpush1.bf16.msra.mxu0 0
      %579 = vmatprep.subr.bf16.mxu0 0
      %580 = vmatpush1.bf16.msra.mxu0 0
      %581 = vmatprep.subr.bf16.mxu0 0
      %582 = vmatpush1.bf16.msra.mxu0 0
      %583 = vmatprep.subr.bf16.mxu0 0
      %584 = vmatpush1.bf16.msra.mxu0 0
      %585 = vmatprep.subr.bf16.mxu0 0
      %586 = vmatpush1.bf16.msra.mxu0 0
      %587 = vmatprep.subr.bf16.mxu0 0
      %588 = vmatpush1.bf16.msra.mxu0 0
      %589 = vmatprep.subr.bf16.mxu0 0
      %590 = vmatpush1.bf16.msra.mxu0 0
      %591 = vmatprep.subr.bf16.mxu0 0
      %592 = vmatpush1.bf16.msra.mxu0 0
      %593 = vmatprep.subr.bf16.mxu0 0
      %594 = vmatpush1.bf16.msra.mxu0 0
      %595 = vmatprep.subr.bf16.mxu0 0
      %596 = vmatpush1.bf16.msra.mxu0 0
      %597 = vmatprep.mubr.bf16.mxu0 0
      %598 = vmatmul.mubr.bf16.gmra.mrb[0].mxu0 %v563
      %v599 = vpop.f32.mrb[0].mxu0
      %v600 = vadd.f32 %v548, %v599
      %v601 = vpop.f32.mrb[0].mxu0
      %v602 = vpop.f32.mrb[0].mxu0
      %v603 = vadd.f32 %v548, %v602
      %v604 = vpop.f32.mrb[0].mxu0
      %605 = vdwg.mxu0
      %v606 = vmul.f32 %v600, 0.35355338
      %v607 = vmul.f32 %v603, 0.35355338
      %v608 = vpack.c.bf16 %v607, %v606
      %v609 = vpack.c.bf16 %v603, %v600
      %v610 = vld [vmem:[%s476] sm:$0x1]
      %v611 = vld [vmem:[%s6] sm:$0xf]
      %v612 = vld [vmem:[%s6 + $0x4] sm:$0xf]
      %v613 = vld [vmem:[%s6 + $0x8] sm:$0xf]
      %v614 = vld [vmem:[%s6 + $0xc] sm:$0xf]
      %v615 = vld [vmem:[%s7] sm:$0x1]
      %v617 = vlaneseq
      %v618 = vshrl.u32 %v617, 7
      %v619 = vsub.s32 0, %v618
      %v620 = vrot.slane %v610, %v619
      %623 = vrot.lane.b32.xlu0 %v609, 96
      %v624 = vpop.permute.xlu0 %623
      %vm625 = vcmask 64512
      %v627 = vsel %vm625, %v608, 0
      %v630 = vsel %vm625, %v624, 0
      %632 = vmatprep.subr.bf16.mxu0 0
      %633 = vmatpush1.bf16.xpose.msra.mxu0 %v630
      %634 = vmatprep.subr.bf16.mxu0 0
      %635 = vmatpush1.bf16.xpose.msra.mxu0 0
      %636 = vmatprep.subr.bf16.mxu0 0
      %637 = vmatpush1.bf16.xpose.msra.mxu0 0
      %638 = vmatprep.subr.bf16.mxu0 0
      %639 = vmatpush1.bf16.xpose.msra.mxu0 0
      %640 = vmatprep.subr.bf16.mxu0 0
      %641 = vmatpush1.bf16.xpose.msra.mxu0 0
      %642 = vmatprep.subr.bf16.mxu0 0
      %643 = vmatpush1.bf16.xpose.msra.mxu0 0
      %644 = vmatprep.subr.bf16.mxu0 0
      %645 = vmatpush1.bf16.xpose.msra.mxu0 0
      %646 = vmatprep.subr.bf16.mxu0 0
      %647 = vmatpush1.bf16.xpose.msra.mxu0 0
      %648 = vmatprep.subr.bf16.mxu0 0
      %649 = vmatpush1.bf16.xpose.msra.mxu0 0
      %650 = vmatprep.subr.bf16.mxu0 0
      %651 = vmatpush1.bf16.xpose.msra.mxu0 0
      %652 = vmatprep.subr.bf16.mxu0 0
      %653 = vmatpush1.bf16.xpose.msra.mxu0 0
      %654 = vmatprep.subr.bf16.mxu0 0
      %655 = vmatpush1.bf16.xpose.msra.mxu0 0
      %656 = vmatprep.subr.bf16.mxu0 0
      %657 = vmatpush1.bf16.xpose.msra.mxu0 0
      %658 = vmatprep.subr.bf16.mxu0 0
      %659 = vmatpush1.bf16.xpose.msra.mxu0 0
      %660 = vmatprep.subr.bf16.mxu0 0
      %661 = vmatpush1.bf16.xpose.msra.mxu0 0
      %662 = vmatprep.subr.bf16.mxu0 0
      %663 = vmatpush1.bf16.xpose.msra.mxu0 0
      %664 = vmatprep.mubr.bf16.mxu0 0
      %665 = vmatmul.mubr.bf16.gmra.mrb[0].mxu0 %v627
      %v666 = vpop.f32.mrb[0].mxu0
      %v667 = vadd.f32 %v620, %v666
      %v668 = vpop.f32.mrb[0].mxu0
      %v669 = vpop.f32.mrb[0].mxu0
      %v670 = vadd.f32 %v620, %v669
      %v671 = vpop.f32.mrb[0].mxu0
      %672 = vdwg.mxu0
      %vm673 = vcmask 72704
      %v674 = vsel %vm673, %v667, -inf
      %675 = vmax.xlane.f32.xlu0 %v674
      %v676 = vpop.xlane.xlu0 %675
      %vm677 = vcmask 65536
      %v678 = vsel %vm677, %v670, -inf
      %679 = vmax.xlane.f32.xlu0 %v678
      %v680 = vpop.xlane.xlu0 %679
      %v681 = vsub.f32 %v667, %v676
      %v682 = vsub.f32 %v670, %v680
      %v683 = vmul.f32 %v681, 1.442695
      %v684 = vpow.pop %v683
      %v685 = vmul.f32 %v682, 1.442695
      %v686 = vpow.pop %v685
      %v687 = vsel %vm673, %v684, 0.0
      %688 = vadd.xlane.f32.xlu0 %v687
      %v689 = vpop.xlane.xlu0 %688
      %v690 = vsel %vm677, %v686, 0.0
      %691 = vadd.xlane.f32.xlu0 %v690
      %v692 = vpop.xlane.xlu0 %691
      %v693 = vrcp.pop %v689
      %v694 = vrcp.pop %v692
      %v695 = vmul.f32 %v684, %v693
      %v696 = vmul.f32 %v686, %v694
      %v697 = vpack.c.bf16 %v696, %v695
      %698 = vrot.lane.b32.xlu0 %v609, 64
      %v699 = vpop.permute.xlu0 %698
      %v701 = vsel %vm673, %v697, 0
      %vm703 = vcmask 1043456
      %vm704 = vcmask 1044480
      %v705 = vsel %vm703, 4294967295, 65535
      %v706 = vsel %vm704, %v705, 0
      %v708 = vand.u32 %v699, %v706
      %710 = vmatprep.subr.bf16.mxu0 0
      %711 = vmatpush1.bf16.msra.mxu0 %v708
      %712 = vmatprep.subr.bf16.mxu0 0
      %713 = vmatpush1.bf16.msra.mxu0 0
      %714 = vmatprep.subr.bf16.mxu0 0
      %715 = vmatpush1.bf16.msra.mxu0 0
      %716 = vmatprep.subr.bf16.mxu0 0
      %717 = vmatpush1.bf16.msra.mxu0 0
      %718 = vmatprep.subr.bf16.mxu0 0
      %719 = vmatpush1.bf16.msra.mxu0 0
      %720 = vmatprep.subr.bf16.mxu0 0
      %721 = vmatpush1.bf16.msra.mxu0 0
      %722 = vmatprep.subr.bf16.mxu0 0
      %723 = vmatpush1.bf16.msra.mxu0 0
      %724 = vmatprep.subr.bf16.mxu0 0
      %725 = vmatpush1.bf16.msra.mxu0 0
      %726 = vmatprep.subr.bf16.mxu0 0
      %727 = vmatpush1.bf16.msra.mxu0 0
      %728 = vmatprep.subr.bf16.mxu0 0
      %729 = vmatpush1.bf16.msra.mxu0 0
      %730 = vmatprep.subr.bf16.mxu0 0
      %731 = vmatpush1.bf16.msra.mxu0 0
      %732 = vmatprep.subr.bf16.mxu0 0
      %733 = vmatpush1.bf16.msra.mxu0 0
      %734 = vmatprep.subr.bf16.mxu0 0
      %735 = vmatpush1.bf16.msra.mxu0 0
      %736 = vmatprep.subr.bf16.mxu0 0
      %737 = vmatpush1.bf16.msra.mxu0 0
      %738 = vmatprep.subr.bf16.mxu0 0
      %739 = vmatpush1.bf16.msra.mxu0 0
      %740 = vmatprep.subr.bf16.mxu0 0
      %741 = vmatpush1.bf16.msra.mxu0 0
      %742 = vmatprep.mubr.bf16.mxu0 0
      %743 = vmatmul.mubr.bf16.gmra.mrb[0].mxu0 %v701
      %v744 = vpop.f32.mrb[0].mxu0
      %v745 = vadd.f32 0.0, %v744
      %v746 = vpop.f32.mrb[0].mxu0
      %v747 = vpop.f32.mrb[0].mxu0
      %v748 = vadd.f32 0.0, %v747
      %v749 = vpop.f32.mrb[0].mxu0
      %750 = vdwg.mxu0
      %751 = vst.msk [vmem:[#allocation2] sm:$0xff] %vm625, %v745
      %vm752 = vcmask 57344
      %753 = vst.msk [vmem:[#allocation2 + $0x8] sm:$0x1] %vm752, %v748
      %755 = vrot.lane.b32.xlu0 %v608, 120
      %v756 = vpop.permute.xlu0 %755
      %757 = vrot.lane.b32.xlu0 %v609, 88
      %v758 = vpop.permute.xlu0 %757
      %v760 = vsel %vm625, %v756, 0
      %v763 = vsel %vm625, %v758, 0
      %765 = vmatprep.subr.bf16.mxu0 0
      %766 = vmatpush1.bf16.xpose.msra.mxu0 %v763
      %767 = vmatprep.subr.bf16.mxu0 0
      %768 = vmatpush1.bf16.xpose.msra.mxu0 0
      %769 = vmatprep.subr.bf16.mxu0 0
      %770 = vmatpush1.bf16.xpose.msra.mxu0 0
      %771 = vmatprep.subr.bf16.mxu0 0
      %772 = vmatpush1.bf16.xpose.msra.mxu0 0
      %773 = vmatprep.subr.bf16.mxu0 0
      %774 = vmatpush1.bf16.xpose.msra.mxu0 0
      %775 = vmatprep.subr.bf16.mxu0 0
      %776 = vmatpush1.bf16.xpose.msra.mxu0 0
      %777 = vmatprep.subr.bf16.mxu0 0
      %778 = vmatpush1.bf16.xpose.msra.mxu0 0
      %779 = vmatprep.subr.bf16.mxu0 0
      %780 = vmatpush1.bf16.xpose.msra.mxu0 0
      %781 = vmatprep.subr.bf16.mxu0 0
      %782 = vmatpush1.bf16.xpose.msra.mxu0 0
      %783 = vmatprep.subr.bf16.mxu0 0
      %784 = vmatpush1.bf16.xpose.msra.mxu0 0
      %785 = vmatprep.subr.bf16.mxu0 0
      %786 = vmatpush1.bf16.xpose.msra.mxu0 0
      %787 = vmatprep.subr.bf16.mxu0 0
      %788 = vmatpush1.bf16.xpose.msra.mxu0 0
      %789 = vmatprep.subr.bf16.mxu0 0
      %790 = vmatpush1.bf16.xpose.msra.mxu0 0
      %791 = vmatprep.subr.bf16.mxu0 0
      %792 = vmatpush1.bf16.xpose.msra.mxu0 0
      %793 = vmatprep.subr.bf16.mxu0 0
      %794 = vmatpush1.bf16.xpose.msra.mxu0 0
      %795 = vmatprep.subr.bf16.mxu0 0
      %796 = vmatpush1.bf16.xpose.msra.mxu0 0
      %797 = vmatprep.mubr.bf16.mxu0 0
      %798 = vmatmul.mubr.bf16.gmra.mrb[0].mxu0 %v760
      %v799 = vpop.f32.mrb[0].mxu0
      %v800 = vadd.f32 %v620, %v799
      %v801 = vpop.f32.mrb[0].mxu0
      %v802 = vpop.f32.mrb[0].mxu0
      %v803 = vadd.f32 %v620, %v802
      %v804 = vpop.f32.mrb[0].mxu0
      %805 = vdwg.mxu0
      %v806 = vsel %vm673, %v800, -inf
      %807 = vmax.xlane.f32.xlu0 %v806
      %v808 = vpop.xlane.xlu0 %807
      %v809 = vsel %vm677, %v803, -inf
      %810 = vmax.xlane.f32.xlu0 %v809
      %v811 = vpop.xlane.xlu0 %810
      %v812 = vsub.f32 %v800, %v808
      %v813 = vsub.f32 %v803, %v811
      %v814 = vmul.f32 %v812, 1.442695
      %v815 = vpow.pop %v814
      %v816 = vmul.f32 %v813, 1.442695
      %v817 = vpow.pop %v816
      %v818 = vsel %vm673, %v815, 0.0
      %819 = vadd.xlane.f32.xlu0 %v818
      %v820 = vpop.xlane.xlu0 %819
      %v821 = vsel %vm677, %v817, 0.0
      %822 = vadd.xlane.f32.xlu0 %v821
      %v823 = vpop.xlane.xlu0 %822
      %v824 = vrcp.pop %v820
      %v825 = vrcp.pop %v823
      %v826 = vmul.f32 %v815, %v824
      %v827 = vmul.f32 %v817, %v825
      %v828 = vpack.c.bf16 %v827, %v826
      %829 = vrot.lane.b32.xlu0 %v609, 56
      %v830 = vpop.permute.xlu0 %829
      %v832 = vsel %vm673, %v828, 0
      %v835 = vand.u32 %v830, %v706
      %837 = vmatprep.subr.bf16.mxu0 0
      %838 = vmatpush1.bf16.msra.mxu0 %v835
      %839 = vmatprep.subr.bf16.mxu0 0
      %840 = vmatpush1.bf16.msra.mxu0 0
      %841 = vmatprep.subr.bf16.mxu0 0
      %842 = vmatpush1.bf16.msra.mxu0 0
      %843 = vmatprep.subr.bf16.mxu0 0
      %844 = vmatpush1.bf16.msra.mxu0 0
      %845 = vmatprep.subr.bf16.mxu0 0
      %846 = vmatpush1.bf16.msra.mxu0 0
      %847 = vmatprep.subr.bf16.mxu0 0
      %848 = vmatpush1.bf16.msra.mxu0 0
      %849 = vmatprep.subr.bf16.mxu0 0
      %850 = vmatpush1.bf16.msra.mxu0 0
      %851 = vmatprep.subr.bf16.mxu0 0
      %852 = vmatpush1.bf16.msra.mxu0 0
      %853 = vmatprep.subr.bf16.mxu0 0
      %854 = vmatpush1.bf16.msra.mxu0 0
      %855 = vmatprep.subr.bf16.mxu0 0
      %856 = vmatpush1.bf16.msra.mxu0 0
      %857 = vmatprep.subr.bf16.mxu0 0
      %858 = vmatpush1.bf16.msra.mxu0 0
      %859 = vmatprep.subr.bf16.mxu0 0
      %860 = vmatpush1.bf16.msra.mxu0 0
      %861 = vmatprep.subr.bf16.mxu0 0
      %862 = vmatpush1.bf16.msra.mxu0 0
      %863 = vmatprep.subr.bf16.mxu0 0
      %864 = vmatpush1.bf16.msra.mxu0 0
      %865 = vmatprep.subr.bf16.mxu0 0
      %866 = vmatpush1.bf16.msra.mxu0 0
      %867 = vmatprep.subr.bf16.mxu0 0
      %868 = vmatpush1.bf16.msra.mxu0 0
      %869 = vmatprep.mubr.bf16.mxu0 0
      %870 = vmatmul.mubr.bf16.gmra.mrb[0].mxu0 %v832
      %v871 = vpop.f32.mrb[0].mxu0
      %v872 = vadd.f32 0.0, %v871
      %v873 = vpop.f32.mrb[0].mxu0
      %v874 = vpop.f32.mrb[0].mxu0
      %v875 = vadd.f32 0.0, %v874
      %v876 = vpop.f32.mrb[0].mxu0
      %877 = vdwg.mxu0
      %880 = vrot.lane.b32.xlu0 %v872, 8
      %v881 = vpop.permute.xlu0 %880
      %882 = vrot.lane.b32.xlu0 %v875, 8
      %v883 = vpop.permute.xlu0 %882
      %vm886 = vcmask 130112
      %887 = vst.msk [vmem:[#allocation2] sm:$0xff] %vm886, %v881
      %vm888 = vcmask 122944
      %889 = vst.msk [vmem:[#allocation2 + $0x8] sm:$0x1] %vm888, %v883
      %890 = vrot.lane.b32.xlu0 %v608, 112
      %v891 = vpop.permute.xlu0 %890
      %892 = vrot.lane.b32.xlu0 %v609, 80
      %v893 = vpop.permute.xlu0 %892
      %v895 = vsel %vm625, %v891, 0
      %v898 = vsel %vm625, %v893, 0
      %900 = vmatprep.subr.bf16.mxu0 0
      %901 = vmatpush1.bf16.xpose.msra.mxu0 %v898
      %902 = vmatprep.subr.bf16.mxu0 0
      %903 = vmatpush1.bf16.xpose.msra.mxu0 0
      %904 = vmatprep.subr.bf16.mxu0 0
      %905 = vmatpush1.bf16.xpose.msra.mxu0 0
      %906 = vmatprep.subr.bf16.mxu0 0
      %907 = vmatpush1.bf16.xpose.msra.mxu0 0
      %908 = vmatprep.subr.bf16.mxu0 0
      %909 = vmatpush1.bf16.xpose.msra.mxu0 0
      %910 = vmatprep.subr.bf16.mxu0 0
      %911 = vmatpush1.bf16.xpose.msra.mxu0 0
      %912 = vmatprep.subr.bf16.mxu0 0
      %913 = vmatpush1.bf16.xpose.msra.mxu0 0
      %914 = vmatprep.subr.bf16.mxu0 0
      %915 = vmatpush1.bf16.xpose.msra.mxu0 0
      %916 = vmatprep.subr.bf16.mxu0 0
      %917 = vmatpush1.bf16.xpose.msra.mxu0 0
      %918 = vmatprep.subr.bf16.mxu0 0
      %919 = vmatpush1.bf16.xpose.msra.mxu0 0
      %920 = vmatprep.subr.bf16.mxu0 0
      %921 = vmatpush1.bf16.xpose.msra.mxu0 0
      %922 = vmatprep.subr.bf16.mxu0 0
      %923 = vmatpush1.bf16.xpose.msra.mxu0 0
      %924 = vmatprep.subr.bf16.mxu0 0
      %925 = vmatpush1.bf16.xpose.msra.mxu0 0
      %926 = vmatprep.subr.bf16.mxu0 0
      %927 = vmatpush1.bf16.xpose.msra.mxu0 0
      %928 = vmatprep.subr.bf16.mxu0 0
      %929 = vmatpush1.bf16.xpose.msra.mxu0 0
      %930 = vmatprep.subr.bf16.mxu0 0
      %931 = vmatpush1.bf16.xpose.msra.mxu0 0
      %932 = vmatprep.mubr.bf16.mxu0 0
      %933 = vmatmul.mubr.bf16.gmra.mrb[0].mxu0 %v895
      %v934 = vpop.f32.mrb[0].mxu0
      %v935 = vadd.f32 %v620, %v934
      %v936 = vpop.f32.mrb[0].mxu0
      %v937 = vpop.f32.mrb[0].mxu0
      %v938 = vadd.f32 %v620, %v937
      %v939 = vpop.f32.mrb[0].mxu0
      %940 = vdwg.mxu0
      %v941 = vsel %vm673, %v935, -inf
      %942 = vmax.xlane.f32.xlu0 %v941
      %v943 = vpop.xlane.xlu0 %942
      %v944 = vsel %vm677, %v938, -inf
      %945 = vmax.xlane.f32.xlu0 %v944
      %v946 = vpop.xlane.xlu0 %945
      %v947 = vsub.f32 %v935, %v943
      %v948 = vsub.f32 %v938, %v946
      %v949 = vmul.f32 %v947, 1.442695
      %v950 = vpow.pop %v949
      %v951 = vmul.f32 %v948, 1.442695
      %v952 = vpow.pop %v951
      %v953 = vsel %vm673, %v950, 0.0
      %954 = vadd.xlane.f32.xlu0 %v953
      %v955 = vpop.xlane.xlu0 %954
      %v956 = vsel %vm677, %v952, 0.0
      %957 = vadd.xlane.f32.xlu0 %v956
      %v958 = vpop.xlane.xlu0 %957
      %v959 = vrcp.pop %v955
      %v960 = vrcp.pop %v958
      %v961 = vmul.f32 %v950, %v959
      %v962 = vmul.f32 %v952, %v960
      %v963 = vpack.c.bf16 %v962, %v961
      %964 = vrot.lane.b32.xlu0 %v609, 48
      %v965 = vpop.permute.xlu0 %964
      %v967 = vsel %vm673, %v963, 0
      %v970 = vand.u32 %v965, %v706
      %972 = vmatprep.subr.bf16.mxu0 0
      %973 = vmatpush1.bf16.msra.mxu0 %v970
      %974 = vmatprep.subr.bf16.mxu0 0
      %975 = vmatpush1.bf16.msra.mxu0 0
      %976 = vmatprep.subr.bf16.mxu0 0
      %977 = vmatpush1.bf16.msra.mxu0 0
      %978 = vmatprep.subr.bf16.mxu0 0
      %979 = vmatpush1.bf16.msra.mxu0 0
      %980 = vmatprep.subr.bf16.mxu0 0
      %981 = vmatpush1.bf16.msra.mxu0 0
      %982 = vmatprep.subr.bf16.mxu0 0
      %983 = vmatpush1.bf16.msra.mxu0 0
      %984 = vmatprep.subr.bf16.mxu0 0
      %985 = vmatpush1.bf16.msra.mxu0 0
      %986 = vmatprep.subr.bf16.mxu0 0
      %987 = vmatpush1.bf16.msra.mxu0 0
      %988 = vmatprep.subr.bf16.mxu0 0
      %989 = vmatpush1.bf16.msra.mxu0 0
      %990 = vmatprep.subr.bf16.mxu0 0
      %991 = vmatpush1.bf16.msra.mxu0 0
      %992 = vmatprep.subr.bf16.mxu0 0
      %993 = vmatpush1.bf16.msra.mxu0 0
      %994 = vmatprep.subr.bf16.mxu0 0
      %995 = vmatpush1.bf16.msra.mxu0 0
      %996 = vmatprep.subr.bf16.mxu0 0
      %997 = vmatpush1.bf16.msra.mxu0 0
      %998 = vmatprep.subr.bf16.mxu0 0
      %999 = vmatpush1.bf16.msra.mxu0 0
      %1000 = vmatprep.subr.bf16.mxu0 0
      %1001 = vmatpush1.bf16.msra.mxu0 0
      %1002 = vmatprep.subr.bf16.mxu0 0
      %1003 = vmatpush1.bf16.msra.mxu0 0
      %1004 = vmatprep.mubr.bf16.mxu0 0
      %1005 = vmatmul.mubr.bf16.gmra.mrb[0].mxu0 %v967
      %v1006 = vpop.f32.mrb[0].mxu0
      %v1007 = vadd.f32 0.0, %v1006
      %v1008 = vpop.f32.mrb[0].mxu0
      %v1009 = vpop.f32.mrb[0].mxu0
      %v1010 = vadd.f32 0.0, %v1009
      %v1011 = vpop.f32.mrb[0].mxu0
      %1012 = vdwg.mxu0
      %1015 = vrot.lane.b32.xlu0 %v1007, 16
      %v1016 = vpop.permute.xlu0 %1015
      %1017 = vrot.lane.b32.xlu0 %v1010, 16
      %v1018 = vpop.permute.xlu0 %1017
      %vm1021 = vcmask 195712
      %1022 = vst.msk [vmem:[#allocation2] sm:$0xff] %vm1021, %v1016
      %vm1023 = vcmask 188544
      %1024 = vst.msk [vmem:[#allocation2 + $0x8] sm:$0x1] %vm1023, %v1018
      %1025 = vrot.lane.b32.xlu0 %v608, 104
      %v1026 = vpop.permute.xlu0 %1025
      %1027 = vrot.lane.b32.xlu0 %v609, 72
      %v1028 = vpop.permute.xlu0 %1027
      %v1030 = vsel %vm625, %v1026, 0
      %v1033 = vsel %vm625, %v1028, 0
      %1035 = vmatprep.subr.bf16.mxu0 0
      %1036 = vmatpush1.bf16.xpose.msra.mxu0 %v1033
      %1037 = vmatprep.subr.bf16.mxu0 0
      %1038 = vmatpush1.bf16.xpose.msra.mxu0 0
      %1039 = vmatprep.subr.bf16.mxu0 0
      %1040 = vmatpush1.bf16.xpose.msra.mxu0 0
      %1041 = vmatprep.subr.bf16.mxu0 0
      %1042 = vmatpush1.bf16.xpose.msra.mxu0 0
      %1043 = vmatprep.subr.bf16.mxu0 0
      %1044 = vmatpush1.bf16.xpose.msra.mxu0 0
      %1045 = vmatprep.subr.bf16.mxu0 0
      %1046 = vmatpush1.bf16.xpose.msra.mxu0 0
      %1047 = vmatprep.subr.bf16.mxu0 0
      %1048 = vmatpush1.bf16.xpose.msra.mxu0 0
      %1049 = vmatprep.subr.bf16.mxu0 0
      %1050 = vmatpush1.bf16.xpose.msra.mxu0 0
      %1051 = vmatprep.subr.bf16.mxu0 0
      %1052 = vmatpush1.bf16.xpose.msra.mxu0 0
      %1053 = vmatprep.subr.bf16.mxu0 0
      %1054 = vmatpush1.bf16.xpose.msra.mxu0 0
      %1055 = vmatprep.subr.bf16.mxu0 0
      %1056 = vmatpush1.bf16.xpose.msra.mxu0 0
      %1057 = vmatprep.subr.bf16.mxu0 0
      %1058 = vmatpush1.bf16.xpose.msra.mxu0 0
      %1059 = vmatprep.subr.bf16.mxu0 0
      %1060 = vmatpush1.bf16.xpose.msra.mxu0 0
      %1061 = vmatprep.subr.bf16.mxu0 0
      %1062 = vmatpush1.bf16.xpose.msra.mxu0 0
      %1063 = vmatprep.subr.bf16.mxu0 0
      %1064 = vmatpush1.bf16.xpose.msra.mxu0 0
      %1065 = vmatprep.subr.bf16.mxu0 0
      %1066 = vmatpush1.bf16.xpose.msra.mxu0 0
      %1067 = vmatprep.mubr.bf16.mxu0 0
      %1068 = vmatmul.mubr.bf16.gmra.mrb[0].mxu0 %v1030
      %v1069 = vpop.f32.mrb[0].mxu0
      %v1070 = vadd.f32 %v620, %v1069
      %v1071 = vpop.f32.mrb[0].mxu0
      %v1072 = vpop.f32.mrb[0].mxu0
      %v1073 = vadd.f32 %v620, %v1072
      %v1074 = vpop.f32.mrb[0].mxu0
      %1075 = vdwg.mxu0
      %v1076 = vsel %vm673, %v1070, -inf
      %1077 = vmax.xlane.f32.xlu0 %v1076
      %v1078 = vpop.xlane.xlu0 %1077
      %v1079 = vsel %vm677, %v1073, -inf
      %1080 = vmax.xlane.f32.xlu0 %v1079
      %v1081 = vpop.xlane.xlu0 %1080
      %v1082 = vsub.f32 %v1070, %v1078
      %v1083 = vsub.f32 %v1073, %v1081
      %v1084 = vmul.f32 %v1082, 1.442695
      %v1085 = vpow.pop %v1084
      %v1086 = vmul.f32 %v1083, 1.442695
      %v1087 = vpow.pop %v1086
      %v1088 = vsel %vm673, %v1085, 0.0
      %1089 = vadd.xlane.f32.xlu0 %v1088
      %v1090 = vpop.xlane.xlu0 %1089
      %v1091 = vsel %vm677, %v1087, 0.0
      %1092 = vadd.xlane.f32.xlu0 %v1091
      %v1093 = vpop.xlane.xlu0 %1092
      %v1094 = vrcp.pop %v1090
      %v1095 = vrcp.pop %v1093
      %v1096 = vmul.f32 %v1085, %v1094
      %v1097 = vmul.f32 %v1087, %v1095
      %v1098 = vpack.c.bf16 %v1097, %v1096
      %1099 = vrot.lane.b32.xlu0 %v609, 40
      %v1100 = vpop.permute.xlu0 %1099
      %v1102 = vsel %vm673, %v1098, 0
      %v1105 = vand.u32 %v1100, %v706
      %1107 = vmatprep.subr.bf16.mxu0 0
      %1108 = vmatpush1.bf16.msra.mxu0 %v1105
      %1109 = vmatprep.subr.bf16.mxu0 0
      %1110 = vmatpush1.bf16.msra.mxu0 0
      %1111 = vmatprep.subr.bf16.mxu0 0
      %1112 = vmatpush1.bf16.msra.mxu0 0
      %1113 = vmatprep.subr.bf16.mxu0 0
      %1114 = vmatpush1.bf16.msra.mxu0 0
      %1115 = vmatprep.subr.bf16.mxu0 0
      %1116 = vmatpush1.bf16.msra.mxu0 0
      %1117 = vmatprep.subr.bf16.mxu0 0
      %1118 = vmatpush1.bf16.msra.mxu0 0
      %1119 = vmatprep.subr.bf16.mxu0 0
      %1120 = vmatpush1.bf16.msra.mxu0 0
      %1121 = vmatprep.subr.bf16.mxu0 0
      %1122 = vmatpush1.bf16.msra.mxu0 0
      %1123 = vmatprep.subr.bf16.mxu0 0
      %1124 = vmatpush1.bf16.msra.mxu0 0
      %1125 = vmatprep.subr.bf16.mxu0 0
      %1126 = vmatpush1.bf16.msra.mxu0 0
      %1127 = vmatprep.subr.bf16.mxu0 0
      %1128 = vmatpush1.bf16.msra.mxu0 0
      %1129 = vmatprep.subr.bf16.mxu0 0
      %1130 = vmatpush1.bf16.msra.mxu0 0
      %1131 = vmatprep.subr.bf16.mxu0 0
      %1132 = vmatpush1.bf16.msra.mxu0 0
      %1133 = vmatprep.subr.bf16.mxu0 0
      %1134 = vmatpush1.bf16.msra.mxu0 0
      %1135 = vmatprep.subr.bf16.mxu0 0
      %1136 = vmatpush1.bf16.msra.mxu0 0
      %1137 = vmatprep.subr.bf16.mxu0 0
      %1138 = vmatpush1.bf16.msra.mxu0 0
      %1139 = vmatprep.mubr.bf16.mxu0 0
      %1140 = vmatmul.mubr.bf16.gmra.mrb[0].mxu0 %v1102
      %v1141 = vpop.f32.mrb[0].mxu0
      %v1142 = vadd.f32 0.0, %v1141
      %v1143 = vpop.f32.mrb[0].mxu0
      %v1144 = vpop.f32.mrb[0].mxu0
      %v1145 = vadd.f32 0.0, %v1144
      %v1146 = vpop.f32.mrb[0].mxu0
      %1147 = vdwg.mxu0
      %1150 = vrot.lane.b32.xlu0 %v1142, 24
      %v1151 = vpop.permute.xlu0 %1150
      %1152 = vrot.lane.b32.xlu0 %v1145, 24
      %v1153 = vpop.permute.xlu0 %1152
      %vm1156 = vcmask 261312
      %1157 = vst.msk [vmem:[#allocation2] sm:$0xff] %vm1156, %v1151
      %vm1158 = vcmask 254144
      %1159 = vst.msk [vmem:[#allocation2 + $0x8] sm:$0x1] %vm1158, %v1153
      %v1160 = vld [vmem:[#allocation2] sm:$0xff]
      %v1161 = vld [vmem:[#allocation2 + $0x8] sm:$0x1]
      %v1162 = vpack.c.bf16 %v1161, %v1160
      %v1164 = vlaneseq
      %v1165 = vshrl.u32 %v1164, 7
      %v1166 = vsub.s32 0, %v1165
      %v1167 = vrot.slane %v615, %v1166
      %v1173 = vunpack.c.l.b16 %v611
      %v1174 = vunpack.c.l.b16 %v612
      %v1175 = vunpack.c.l.b16 %v613
      %v1176 = vunpack.c.l.b16 %v614
      %v1177 = vpack.c.b16 %v1174, %v1173
      %v1178 = vpack.c.b16 %v1176, %v1175
      %v1182 = vsel %vm487, %v1162, 0
      %1184 = vmatprep.subr.bf16.mxu0 0
      %1185 = vmatpush1.bf16.msra.mxu0 %v1177
      %1186 = vmatprep.subr.bf16.mxu0 0
      %1187 = vmatpush1.bf16.msra.mxu0 %v1178
      %1188 = vmatprep.subr.bf16.mxu0 0
      %1189 = vmatpush1.bf16.msra.mxu0 0
      %1190 = vmatprep.subr.bf16.mxu0 0
      %1191 = vmatpush1.bf16.msra.mxu0 0
      %1192 = vmatprep.subr.bf16.mxu0 0
      %1193 = vmatpush1.bf16.msra.mxu0 0
      %1194 = vmatprep.subr.bf16.mxu0 0
      %1195 = vmatpush1.bf16.msra.mxu0 0
      %1196 = vmatprep.subr.bf16.mxu0 0
      %1197 = vmatpush1.bf16.msra.mxu0 0
      %1198 = vmatprep.subr.bf16.mxu0 0
      %1199 = vmatpush1.bf16.msra.mxu0 0
      %1200 = vmatprep.subr.bf16.mxu0 0
      %1201 = vmatpush1.bf16.msra.mxu0 0
      %1202 = vmatprep.subr.bf16.mxu0 0
      %1203 = vmatpush1.bf16.msra.mxu0 0
      %1204 = vmatprep.subr.bf16.mxu0 0
      %1205 = vmatpush1.bf16.msra.mxu0 0
      %1206 = vmatprep.subr.bf16.mxu0 0
      %1207 = vmatpush1.bf16.msra.mxu0 0
      %1208 = vmatprep.subr.bf16.mxu0 0
      %1209 = vmatpush1.bf16.msra.mxu0 0
      %1210 = vmatprep.subr.bf16.mxu0 0
      %1211 = vmatpush1.bf16.msra.mxu0 0
      %1212 = vmatprep.subr.bf16.mxu0 0
      %1213 = vmatpush1.bf16.msra.mxu0 0
      %1214 = vmatprep.subr.bf16.mxu0 0
      %1215 = vmatpush1.bf16.msra.mxu0 0
      %1216 = vmatprep.mubr.bf16.mxu0 0
      %1217 = vmatmul.mubr.bf16.gmra.mrb[0].mxu0 %v1182
      %v1218 = vpop.f32.mrb[0].mxu0
      %v1219 = vadd.f32 %v1167, %v1218
      %v1220 = vpop.f32.mrb[0].mxu0
      %v1221 = vpop.f32.mrb[0].mxu0
      %v1222 = vadd.f32 %v1167, %v1221
      %v1223 = vpop.f32.mrb[0].mxu0
      %1224 = vdwg.mxu0
      %v1225 = vadd.f32 %v483, %v1219
      %v1226 = vadd.f32 %v484, %v1222
      %v1227 = vld [vmem:[%s8] sm:$0x1]
      %v1228 = vld [vmem:[%s9] sm:$0x1]
      %v1229 = vsel %vm487, %v1225, 0.0
      %1230 = vadd.xlane.f32.xlu0 %v1229
      %v1231 = vpop.xlane.xlu0 %1230
      %v1232 = vsel %vm491, %v1226, 0.0
      %1233 = vadd.xlane.f32.xlu0 %v1232
      %v1234 = vpop.xlane.xlu0 %1233
      %v1235 = vmul.f32 %v1231, %v495
      %v1236 = vmul.f32 %v1234, %v495
      %v1237 = vmul.f32 %v1225, %v1225
      %v1238 = vmul.f32 %v1226, %v1226
      %v1239 = vsel %vm487, %v1237, 0.0
      %1240 = vadd.xlane.f32.xlu0 %v1239
      %v1241 = vpop.xlane.xlu0 %1240
      %v1242 = vsel %vm491, %v1238, 0.0
      %1243 = vadd.xlane.f32.xlu0 %v1242
      %v1244 = vpop.xlane.xlu0 %1243
      %v1245 = vmul.f32 %v1241, %v495
      %v1246 = vmul.f32 %v1244, %v495
      %v1247 = vmul.f32 %v1235, %v1235
      %v1248 = vmul.f32 %v1236, %v1236
      %v1249 = vsub.f32 %v1245, %v1247
      %v1250 = vsub.f32 %v1246, %v1248
      %v1251 = vmax.f32 %v1249, 0.0
      %v1252 = vmax.f32 %v1250, 0.0
      %v1253 = vsub.f32 %v1225, %v1235
      %v1254 = vsub.f32 %v1226, %v1236
      %v1255 = vadd.f32 %v1251, 1e-06
      %v1256 = vadd.f32 %v1252, 1e-06
      %v1257 = vrsqrt.pop %v1255
      %v1258 = vrsqrt.pop %v1256
      %v1259 = vmul.f32 %v1253, %v1257
      %v1260 = vmul.f32 %v1254, %v1258
      %v1262 = vlaneseq
      %v1263 = vshrl.u32 %v1262, 7
      %v1264 = vsub.s32 0, %v1263
      %v1265 = vrot.slane %v1227, %v1264
      %v1267 = vmul.f32 %v1259, %v1265
      %v1268 = vmul.f32 %v1260, %v1265
      %v1270 = vlaneseq
      %v1271 = vshrl.u32 %v1270, 7
      %v1272 = vsub.s32 0, %v1271
      %v1273 = vrot.slane %v1228, %v1272
      %v1275 = vadd.f32 %v1267, %v1273
      %v1276 = vadd.f32 %v1268, %v1273
      %v1277 = vld [vmem:[%s10] sm:$0xf]
      %v1278 = vld [vmem:[%s10 + $0x4] sm:$0xf]
      %v1279 = vld [vmem:[%s10 + $0x8] sm:$0xf]
      %v1280 = vld [vmem:[%s10 + $0xc] sm:$0xf]
      %v1281 = vld [vmem:[%s11] sm:$0x1]
      %v1282 = vld [vmem:[%s12] sm:$0xf]
      %v1283 = vld [vmem:[%s12 + $0x4] sm:$0xf]
      %v1284 = vld [vmem:[%s12 + $0x8] sm:$0xf]
      %v1285 = vld [vmem:[%s12 + $0xc] sm:$0xf]
      %v1286 = vld [vmem:[%s12 + $0x10] sm:$0xf]
      %v1287 = vld [vmem:[%s12 + $0x14] sm:$0xf]
      %v1288 = vld [vmem:[%s12 + $0x18] sm:$0xf]
      %v1289 = vld [vmem:[%s12 + $0x1c] sm:$0xf]
      %v1290 = vld [vmem:[%s12 + $0x20] sm:$0xf]
      %v1291 = vld [vmem:[%s12 + $0x24] sm:$0xf]
      %v1292 = vld [vmem:[%s12 + $0x28] sm:$0xf]
      %v1293 = vld [vmem:[%s12 + $0x2c] sm:$0xf]
      %v1294 = vld [vmem:[%s12 + $0x30] sm:$0xf]
      %v1295 = vld [vmem:[%s12 + $0x34] sm:$0xf]
      %v1296 = vld [vmem:[%s12 + $0x38] sm:$0xf]
      %v1297 = vld [vmem:[%s12 + $0x3c] sm:$0xf]
      %v1298 = vld [vmem:[%s13] sm:$0x1]
      %v1299 = vpack.c.bf16 %v1276, %v1275
      %v1301 = vlaneseq
      %v1302 = vshrl.u32 %v1301, 7
      %v1303 = vsub.s32 0, %v1302
      %v1304 = vrot.slane %v1281, %v1303
      %v1310 = vunpack.c.l.b16 %v1277
      %v1311 = vunpack.c.l.b16 %v1278
      %v1312 = vunpack.c.l.b16 %v1279
      %v1313 = vunpack.c.l.b16 %v1280
      %v1314 = vpack.c.b16 %v1311, %v1310
      %v1315 = vpack.c.b16 %v1313, %v1312
      %v1319 = vsel %vm487, %v1299, 0
      %1321 = vmatprep.subr.bf16.mxu0 0
      %1322 = vmatpush1.bf16.msra.mxu0 %v1314
      %1323 = vmatprep.subr.bf16.mxu0 0
      %1324 = vmatpush1.bf16.msra.mxu0 %v1315
      %1325 = vmatprep.subr.bf16.mxu0 0
      %1326 = vmatpush1.bf16.msra.mxu0 0
      %1327 = vmatprep.subr.bf16.mxu0 0
      %1328 = vmatpush1.bf16.msra.mxu0 0
      %1329 = vmatprep.subr.bf16.mxu0 0
      %1330 = vmatpush1.bf16.msra.mxu0 0
      %1331 = vmatprep.subr.bf16.mxu0 0
      %1332 = vmatpush1.bf16.msra.mxu0 0
      %1333 = vmatprep.subr.bf16.mxu0 0
      %1334 = vmatpush1.bf16.msra.mxu0 0
      %1335 = vmatprep.subr.bf16.mxu0 0
      %1336 = vmatpush1.bf16.msra.mxu0 0
      %1337 = vmatprep.subr.bf16.mxu0 0
      %1338 = vmatpush1.bf16.msra.mxu0 0
      %1339 = vmatprep.subr.bf16.mxu0 0
      %1340 = vmatpush1.bf16.msra.mxu0 0
      %1341 = vmatprep.subr.bf16.mxu0 0
      %1342 = vmatpush1.bf16.msra.mxu0 0
      %1343 = vmatprep.subr.bf16.mxu0 0
      %1344 = vmatpush1.bf16.msra.mxu0 0
      %1345 = vmatprep.subr.bf16.mxu0 0
      %1346 = vmatpush1.bf16.msra.mxu0 0
      %1347 = vmatprep.subr.bf16.mxu0 0
      %1348 = vmatpush1.bf16.msra.mxu0 0
      %1349 = vmatprep.subr.bf16.mxu0 0
      %1350 = vmatpush1.bf16.msra.mxu0 0
      %1351 = vmatprep.subr.bf16.mxu0 0
      %1352 = vmatpush1.bf16.msra.mxu0 0
      %1353 = vmatprep.mubr.bf16.mxu0 0
      %1354 = vmatmul.mubr.bf16.gmra.mrb[0].mxu0 %v1319
      %v1355 = vpop.f32.mrb[0].mxu0
      %v1356 = vadd.f32 %v1304, %v1355
      %v1357 = vpop.f32.mrb[0].mxu0
      %v1358 = vpop.f32.mrb[0].mxu0
      %v1359 = vadd.f32 %v1304, %v1358
      %v1360 = vpop.f32.mrb[0].mxu0
      %1361 = vdwg.mxu0
      %v1362 = vmax.f32 %v1356, 0.0
      %v1363 = vmax.f32 %v1359, 0.0
      %v1364 = vpack.c.bf16 %v1363, %v1362
      %v1366 = vlaneseq
      %v1367 = vshrl.u32 %v1366, 7
      %v1368 = vsub.s32 0, %v1367
      %v1369 = vrot.slane %v1298, %v1368
      %v1387 = vunpack.c.l.b16 %v1282
      %v1388 = vunpack.c.l.b16 %v1283
      %v1389 = vunpack.c.l.b16 %v1284
      %v1390 = vunpack.c.l.b16 %v1285
      %v1391 = vunpack.c.l.b16 %v1286
      %v1392 = vunpack.c.l.b16 %v1287
      %v1393 = vunpack.c.l.b16 %v1288
      %v1394 = vunpack.c.l.b16 %v1289
      %v1395 = vunpack.c.l.b16 %v1290
      %v1396 = vunpack.c.l.b16 %v1291
      %v1397 = vunpack.c.l.b16 %v1292
      %v1398 = vunpack.c.l.b16 %v1293
      %v1399 = vunpack.c.l.b16 %v1294
      %v1400 = vunpack.c.l.b16 %v1295
      %v1401 = vunpack.c.l.b16 %v1296
      %v1402 = vunpack.c.l.b16 %v1297
      %v1403 = vpack.c.b16 %v1388, %v1387
      %v1404 = vpack.c.b16 %v1390, %v1389
      %v1405 = vpack.c.b16 %v1392, %v1391
      %v1406 = vpack.c.b16 %v1394, %v1393
      %v1407 = vpack.c.b16 %v1396, %v1395
      %v1408 = vpack.c.b16 %v1398, %v1397
      %v1409 = vpack.c.b16 %v1400, %v1399
      %v1410 = vpack.c.b16 %v1402, %v1401
      %1419 = vmatprep.subr.bf16.mxu0 0
      %1420 = vmatpush1.bf16.msra.mxu0 %v1403
      %1421 = vmatprep.subr.bf16.mxu0 0
      %1422 = vmatpush1.bf16.msra.mxu0 %v1404
      %1423 = vmatprep.subr.bf16.mxu0 0
      %1424 = vmatpush1.bf16.msra.mxu0 %v1405
      %1425 = vmatprep.subr.bf16.mxu0 0
      %1426 = vmatpush1.bf16.msra.mxu0 %v1406
      %1427 = vmatprep.subr.bf16.mxu0 0
      %1428 = vmatpush1.bf16.msra.mxu0 %v1407
      %1429 = vmatprep.subr.bf16.mxu0 0
      %1430 = vmatpush1.bf16.msra.mxu0 %v1408
      %1431 = vmatprep.subr.bf16.mxu0 0
      %1432 = vmatpush1.bf16.msra.mxu0 %v1409
      %1433 = vmatprep.subr.bf16.mxu0 0
      %1434 = vmatpush1.bf16.msra.mxu0 %v1410
      %1435 = vmatprep.subr.bf16.mxu0 0
      %1436 = vmatpush1.bf16.msra.mxu0 0
      %1437 = vmatprep.subr.bf16.mxu0 0
      %1438 = vmatpush1.bf16.msra.mxu0 0
      %1439 = vmatprep.subr.bf16.mxu0 0
      %1440 = vmatpush1.bf16.msra.mxu0 0
      %1441 = vmatprep.subr.bf16.mxu0 0
      %1442 = vmatpush1.bf16.msra.mxu0 0
      %1443 = vmatprep.subr.bf16.mxu0 0
      %1444 = vmatpush1.bf16.msra.mxu0 0
      %1445 = vmatprep.subr.bf16.mxu0 0
      %1446 = vmatpush1.bf16.msra.mxu0 0
      %1447 = vmatprep.subr.bf16.mxu0 0
      %1448 = vmatpush1.bf16.msra.mxu0 0
      %1449 = vmatprep.subr.bf16.mxu0 0
      %1450 = vmatpush1.bf16.msra.mxu0 0
      %1451 = vmatprep.mubr.bf16.mxu0 0
      %1452 = vmatmul.mubr.bf16.gmra.mrb[0].mxu0 %v1364
      %v1453 = vpop.f32.mrb[0].mxu0
      %v1454 = vadd.f32 %v1369, %v1453
      %v1455 = vpop.f32.mrb[0].mxu0
      %v1456 = vpop.f32.mrb[0].mxu0
      %v1457 = vadd.f32 %v1369, %v1456
      %v1458 = vpop.f32.mrb[0].mxu0
      %1459 = vdwg.mxu0
      %v1460 = vadd.f32 %v1225, %v1454
      %v1461 = vadd.f32 %v1226, %v1457
      %1462 = vst.msk [vmem:[%s481] sm:$0xff] %vm487, %v1460
      %1463 = vst.msk [vmem:[%s481 + $0x8] sm:$0x1] %vm491, %v1461
      %p1464 = scmp.lt.s32.totalorder %s25, 1
      %s1465 = scalar_select %p1464, %s25, 1
      %s1466 = smul.addr %s1465, 2
      %s1467 = smul.addr %s1466, 8
      %s1468 = scalar_lea.vmem %s14, %s1467
      // Predicated region
      $region77: #{tpu_custom_call.1} parent=75 // pred_check
        %p1469 = pneg %p347
      $region78: #{tpu_custom_call.1} parent=75 // pred_check_branch
        %1471 = sbr.rel (%p1469) target = $region80
      $region79: #{tpu_custom_call.1} parent=75 // pred_region
        _
      $region80: #{tpu_custom_call.1} parent=75 // pred_fallthru
        _
    $region76: #{tpu_custom_call.1} parent=5 // pred_fallthru
      _
    %p1472 = scmp.le.s32.totalorder 2, %s20
    // Predicated region
    $region81: #{tpu_custom_call.1} parent=5 // pred_check
      %p1473 = pneg %p1472
    $region82: #{tpu_custom_call.1} parent=5 // pred_check_branch
      %1475 = sbr.rel (%p1473) target = $region84
    $region83: #{tpu_custom_call.1} parent=5 // pred_region
      %s1476 = ssub.s32 %s20, 2
      // Predicated region
      $region85: #{tpu_custom_call.1} parent=83 // pred_check
        %p1477 = pneg %p353
      $region86: #{tpu_custom_call.1} parent=83 // pred_check_branch
        %1479 = sbr.rel (%p1477) target = $region88
      $region87: #{tpu_custom_call.1} parent=83 // pred_region
        %p1480 = scmp.lt.s32.totalorder %s26, 1
        %s1481 = scalar_select %p1480, %s26, 1
        %s1482 = smul.addr %s1481, 2
        %s1483 = smul.addr %s1482, 8
        %s1484 = scalar_lea.vmem %s14, %s1483
      $region88: #{tpu_custom_call.1} parent=83 // pred_fallthru
        _
    $region84: #{tpu_custom_call.1} parent=5 // pred_fallthru
      _
  $region6: #{tpu_custom_call.1} parent=0 // loop_footer
    %s24 = sadd.s32 1, %s20
  $region7: #{tpu_custom_call.1} parent=0 // loop_footer_branch
    %19 = sbr.rel target = $region3
  $region8: #{tpu_custom_call.1} parent=0 // loop_exit
    _

</llo_original>
